<compile_context>
chip_gen: v5e
topology: v5e:2x2
jax: 0.10.0
libtpu: 0.0.40
codegen_flags: <defaults>
</compile_context>

<pallas_src>
import math
import jax
import jax.numpy as jnp
from jax.experimental import pallas as pl

# ---- small synthetic config ----
VOCAB = 64
SEQ = 8
HIDDEN = 32
NUM_HEADS = 4
HEAD_DIM = HIDDEN // NUM_HEADS
INTERMEDIATE = 64
NUM_LAYERS = 2
NUM_LABELS = 3
LN_EPS = 1e-7
OUT_LANES = 128          # lane-padded output slab width


# ---------------- in-kernel helpers ----------------
def _layernorm(x, gamma, beta):
    mu = jnp.mean(x, axis=-1, keepdims=True)
    var = jnp.mean((x - mu) ** 2, axis=-1, keepdims=True)
    return (x - mu) * jax.lax.rsqrt(var + LN_EPS) * gamma + beta


def _gelu(x):
    # tanh-approx gelu (VPU/EUP friendly)
    return 0.5 * x * (1.0 + jnp.tanh(0.7978845608028654 * (x + 0.044715 * x * x * x)))


# ---------------- fused whole-model kernel (no grid, layers unrolled) ----------------
def fused_kernel(ids_ref, maskb_ref, pemb_ref,
                 wemb_ref, emb_g_ref, emb_b_ref,
                 wqkv_ref, bqkv_ref, wo_ref, bo_ref, g1_ref, b1_ref,
                 wi_ref, bi_ref, wd_ref, bd_ref, g2_ref, b2_ref,
                 wp_ref, bp_ref, wc_ref, bc_ref, cw_ref, y1h_ref,
                 out_ref):
    BS = ids_ref.shape[0]            # B*S tokens folded into rows
    B = y1h_ref.shape[0]

    # ---- embedding: in-kernel one-hot gather + absolute pos emb + layernorm ----
    ids = ids_ref[...]                                              # (BS, 1) int32
    iota_v = jax.lax.broadcasted_iota(jnp.int32, (BS, VOCAB), 1)
    onehot = (iota_v == ids).astype(jnp.bfloat16)                   # exact in bf16
    emb = jnp.dot(onehot, wemb_ref[...], preferred_element_type=jnp.float32)
    emb = emb + pemb_ref[...]
    x = _layernorm(emb, emb_g_ref[...], emb_b_ref[...])             # (BS, H) f32

    mask = maskb_ref[...]                                           # (BS, BS) additive

    # ---- unrolled encoder layers ----
    for l in range(NUM_LAYERS):
        # fused QKV: ONE lane-dense (BS,H)x(H,3H) MXU dot, bias as one (1,3H) row.
        qkv = jnp.dot(x.astype(jnp.bfloat16), wqkv_ref[l],
                      preferred_element_type=jnp.float32) + bqkv_ref[l]    # (BS, 3H)

        # head-major q/k/v via static lane slices (attn scale pre-folded into Wq)
        qh = jnp.stack(
            [qkv[:, h * HEAD_DIM:(h + 1) * HEAD_DIM] for h in range(NUM_HEADS)], 0)
        kh = jnp.stack(
            [qkv[:, HIDDEN + h * HEAD_DIM:HIDDEN + (h + 1) * HEAD_DIM]
             for h in range(NUM_HEADS)], 0)
        vh = jnp.stack(
            [qkv[:, 2 * HIDDEN + h * HEAD_DIM:2 * HIDDEN + (h + 1) * HEAD_DIM]
             for h in range(NUM_HEADS)], 0)                          # (NH, BS, HD)

        s = jnp.einsum('hqd,hkd->hqk',
                       qh.astype(jnp.bfloat16), kh.astype(jnp.bfloat16),
                       preferred_element_type=jnp.float32)           # (NH, BS, BS)
        s = s + mask[None, :, :]                                     # block-diag + pad

        # one fused softmax over all heads (f32, EUP reciprocal)
        m = jnp.max(s, axis=-1, keepdims=True)
        p = jnp.exp(s - m)
        p = p * pl.reciprocal(jnp.sum(p, axis=-1, keepdims=True), approx=True)

        ctx = jnp.einsum('hqk,hkd->hqd',
                         p.astype(jnp.bfloat16), vh.astype(jnp.bfloat16),
                         preferred_element_type=jnp.float32)         # (NH, BS, HD)

        # fused output projection: concat heads along lanes, ONE (H,H) dot
        ctx2 = jnp.concatenate([ctx[h] for h in range(NUM_HEADS)], axis=-1)  # (BS, H)
        attn = jnp.dot(ctx2.astype(jnp.bfloat16), wo_ref[l],
                       preferred_element_type=jnp.float32) + bo_ref[l]

        h1 = _layernorm(attn + x, g1_ref[l], b1_ref[l])

        # feed-forward
        ff = _gelu(jnp.dot(h1.astype(jnp.bfloat16), wi_ref[l],
                           preferred_element_type=jnp.float32) + bi_ref[l])
        ff = jnp.dot(ff.astype(jnp.bfloat16), wd_ref[l],
                     preferred_element_type=jnp.float32) + bd_ref[l]
        x = _layernorm(ff + h1, g2_ref[l], b2_ref[l])

    # ---- pooler + classifier + weighted CE ----
    # select token-0 (CLS) rows of each sequence with a one-hot matmul
    tok = jax.lax.broadcasted_iota(jnp.int32, (B, BS), 1)
    row = jax.lax.broadcasted_iota(jnp.int32, (B, BS), 0) * SEQ
    sel = (tok == row).astype(jnp.bfloat16)                          # (B, BS)
    cls = jnp.dot(sel, x.astype(jnp.bfloat16),
                  preferred_element_type=jnp.float32)                # (B, H)

    pooled = _gelu(jnp.dot(cls.astype(jnp.bfloat16), wp_ref[...],
                           preferred_element_type=jnp.float32) + bp_ref[...])

    # classifier weights pre-padded to OUT_LANES columns -> lane-dense (B,128) slab
    slab = jnp.dot(pooled.astype(jnp.bfloat16), wc_ref[...],
                   preferred_element_type=jnp.float32) + bc_ref[...]  # (B, OUT_LANES)
    # nn.Dropout(p=0.3) on logits: identity at inference

    # weighted cross-entropy (nn.CrossEntropyLoss(weight=class_weights))
    logits = slab[:, :NUM_LABELS]
    mm = jnp.max(logits, axis=-1, keepdims=True)
    lse = mm + jnp.log(jnp.sum(jnp.exp(logits - mm), axis=-1, keepdims=True))
    logp = logits - lse
    y1h = y1h_ref[...]                                               # (B, L) one-hot
    picked = jnp.sum(y1h * logp, axis=-1, keepdims=True)             # (B, 1)
    w_i = jnp.sum(y1h * cw_ref[...], axis=-1, keepdims=True)         # (B, 1)
    num = jnp.sum(w_i * picked, axis=0, keepdims=True)               # (1, 1)
    den = jnp.sum(w_i, axis=0, keepdims=True)                        # (1, 1)
    loss = -(num / den)

    # insert loss into lane NUM_LABELS with a lane mask (no concatenate); single store
    lane = jax.lax.broadcasted_iota(jnp.int32, (B, OUT_LANES), 1)
    out_ref[...] = jnp.where(lane == NUM_LABELS, loss, slab)


# ---------------- wrapper (single pallas_call, whole arrays resident in VMEM) --------
def _fused_forward(params, ids, maskb, pemb_tiled, y1h, batch):
    return pl.pallas_call(
        fused_kernel,
        out_shape=jax.ShapeDtypeStruct((batch, OUT_LANES), jnp.float32),
    )(ids, maskb, pemb_tiled,
      params["wemb"], params["emb_g"], params["emb_b"],
      params["wqkv"], params["bqkv"], params["wo"], params["bo"],
      params["g1"], params["b1"],
      params["wi"], params["bi"], params["wd"], params["bd"],
      params["g2"], params["b2"],
      params["wp"], params["bp"], params["wc_pad"], params["bc_pad"],
      params["cw"], y1h)


def weighted_deberta_forward(params, input_ids, attention_mask, labels=None):
    B, S = input_ids.shape
    assert S == SEQ
    BS = B * S

    ids = input_ids.reshape(BS, 1).astype(jnp.int32)
    pemb_tiled = jnp.tile(params["pemb"], (B, 1))                    # (B*S, H)

    # block-diagonal (no cross-batch attention) + key-padding additive mask bias
    batch_ids = jnp.repeat(jnp.arange(B), S)
    same_batch = batch_ids[:, None] == batch_ids[None, :]
    key_valid = attention_mask.reshape(BS).astype(bool)
    maskb = jnp.where(same_batch & key_valid[None, :], 0.0, -1e9).astype(jnp.float32)

    if labels is None:
        y1h = jax.nn.one_hot(jnp.zeros((B,), jnp.int32), NUM_LABELS, dtype=jnp.float32)
        out = _fused_forward(params, ids, maskb, pemb_tiled, y1h, B)
        return None, out[:, :NUM_LABELS]

    y1h = jax.nn.one_hot(labels, NUM_LABELS, dtype=jnp.float32)
    out = _fused_forward(params, ids, maskb, pemb_tiled, y1h, B)
    logits = out[:, :NUM_LABELS]
    loss = out[0, NUM_LABELS]
    return loss, logits


# ---------------- deterministic parameter init (fused / padded weight slabs) ----------
def init_params(key):
    ks = jax.random.split(key, 10)

    def w(k, shape, scale=0.02):
        return jax.random.normal(k, shape, jnp.float32) * scale

    L, H, I = NUM_LAYERS, HIDDEN, INTERMEDIATE

    # fused QKV weight slab (attention scale folded into the Q columns)
    wq = w(ks[2], (L, H, H)) * (1.0 / math.sqrt(HEAD_DIM))
    wk = w(ks[3], (L, H, H))
    wv = w(ks[4], (L, H, H))
    wqkv = jnp.concatenate([wq, wk, wv], axis=-1)                    # (L, H, 3H)

    # classifier weights lane-padded to OUT_LANES (zero columns beyond NUM_LABELS)
    wc = w(ks[9], (H, NUM_LABELS))
    wc_pad = jnp.pad(wc, ((0, 0), (0, OUT_LANES - NUM_LABELS)))

    params = {
        "wemb": w(ks[0], (VOCAB, H)).astype(jnp.bfloat16),
        "pemb": w(ks[1], (SEQ, H)),
        "emb_g": jnp.ones((1, H), jnp.float32),
        "emb_b": jnp.zeros((1, H), jnp.float32),
        "wqkv": wqkv.astype(jnp.bfloat16),
        "bqkv": jnp.zeros((L, 1, 3 * H), jnp.float32),
        "wo": w(ks[5], (L, H, H)).astype(jnp.bfloat16),
        "bo": jnp.zeros((L, 1, H), jnp.float32),
        "g1": jnp.ones((L, 1, H), jnp.float32), "b1": jnp.zeros((L, 1, H), jnp.float32),
        "wi": w(ks[6], (L, H, I)).astype(jnp.bfloat16),
        "bi": jnp.zeros((L, 1, I), jnp.float32),
        "wd": w(ks[7], (L, I, H)).astype(jnp.bfloat16),
        "bd": jnp.zeros((L, 1, H), jnp.float32),
        "g2": jnp.ones((L, 1, H), jnp.float32), "b2": jnp.zeros((L, 1, H), jnp.float32),
        "wp": w(ks[8], (H, H)).astype(jnp.bfloat16),
        "bp": jnp.zeros((1, H), jnp.float32),
        "wc_pad": wc_pad.astype(jnp.bfloat16),
        "bc_pad": jnp.zeros((1, OUT_LANES), jnp.float32),
        "cw": jnp.array([[1.0, 2.0, 0.5]], jnp.float32),             # class_weights
    }
    return params


if __name__ == "__main__":
    key = jax.random.PRNGKey(0)
    pkey, ikey = jax.random.split(key)
    params = init_params(pkey)

    B = 2
    input_ids = jax.random.randint(ikey, (B, SEQ), 0, VOCAB, dtype=jnp.int32)
    attention_mask = jnp.array([[1, 1, 1, 1, 1, 1, 0, 0],
                                [1, 1, 1, 1, 1, 1, 1, 1]], jnp.int32)
    labels = jnp.array([0, 2], jnp.int32)

    loss, logits = weighted_deberta_forward(params, input_ids, attention_mask, labels)
    jax.block_until_ready((loss, logits))
    assert logits.shape == (B, NUM_LABELS)
    assert loss.shape == ()
    assert bool(jnp.isfinite(loss)) and bool(jnp.all(jnp.isfinite(logits)))

    # logits-only (labels=None) path
    _, logits2 = weighted_deberta_forward(params, input_ids, attention_mask)
    jax.block_until_ready(logits2)
    assert logits2.shape == (B, NUM_LABELS)

    print("KERNEL_OK")
</pallas_src>

<mosaic_0001>
module attributes {stable_mosaic.version = 11 : i64} {
  func.func @fused_kernel(%arg0: memref<16x1xi32, #tpu.memory_space<vmem>>, %arg1: memref<16x16xf32, #tpu.memory_space<vmem>>, %arg2: memref<16x32xf32, #tpu.memory_space<vmem>>, %arg3: memref<64x32xbf16, #tpu.memory_space<vmem>>, %arg4: memref<1x32xf32, #tpu.memory_space<vmem>>, %arg5: memref<1x32xf32, #tpu.memory_space<vmem>>, %arg6: memref<2x32x96xbf16, #tpu.memory_space<vmem>>, %arg7: memref<2x1x96xf32, #tpu.memory_space<vmem>>, %arg8: memref<2x32x32xbf16, #tpu.memory_space<vmem>>, %arg9: memref<2x1x32xf32, #tpu.memory_space<vmem>>, %arg10: memref<2x1x32xf32, #tpu.memory_space<vmem>>, %arg11: memref<2x1x32xf32, #tpu.memory_space<vmem>>, %arg12: memref<2x32x64xbf16, #tpu.memory_space<vmem>>, %arg13: memref<2x1x64xf32, #tpu.memory_space<vmem>>, %arg14: memref<2x64x32xbf16, #tpu.memory_space<vmem>>, %arg15: memref<2x1x32xf32, #tpu.memory_space<vmem>>, %arg16: memref<2x1x32xf32, #tpu.memory_space<vmem>>, %arg17: memref<2x1x32xf32, #tpu.memory_space<vmem>>, %arg18: memref<32x32xbf16, #tpu.memory_space<vmem>>, %arg19: memref<1x32xf32, #tpu.memory_space<vmem>>, %arg20: memref<32x128xbf16, #tpu.memory_space<vmem>>, %arg21: memref<1x128xf32, #tpu.memory_space<vmem>>, %arg22: memref<1x3xf32, #tpu.memory_space<vmem>>, %arg23: memref<2x3xf32, #tpu.memory_space<vmem>>, %arg24: memref<2x128xf32, #tpu.memory_space<vmem>>) attributes {dimension_semantics = [], scalar_prefetch = 0 : i64, scratch_operands = 0 : i64, tpu.core_type = #tpu.core_type<tc>} {
    %c0 = arith.constant 0 : index
    %c0_0 = arith.constant 0 : index
    %0 = vector.load %arg0[%c0, %c0_0] : memref<16x1xi32, #tpu.memory_space<vmem>>, vector<16x1xi32>
    %1 = tpu.iota {dimensions = array<i32: 1>} : vector<16x64xi32>
    %2 = vector.broadcast %0 : vector<16x1xi32> to vector<16x64xi32>
    %3 = arith.cmpi eq, %1, %2 : vector<16x64xi32>
    %4 = arith.extui %3 : vector<16x64xi1> to vector<16x64xi32>
    %5 = arith.sitofp %4 : vector<16x64xi32> to vector<16x64xf32>
    %6 = arith.truncf %5 : vector<16x64xf32> to vector<16x64xbf16>
    %c0_1 = arith.constant 0 : index
    %c0_2 = arith.constant 0 : index
    %7 = vector.load %arg3[%c0_1, %c0_2] : memref<64x32xbf16, #tpu.memory_space<vmem>>, vector<64x32xbf16>
    %cst = arith.constant dense<0.000000e+00> : vector<16x32xf32>
    %8 = tpu.matmul %6, %7, %cst {dimension_numbers = #tpu.dot_dimension_numbers<[1], [0], [0], [1], [0, 0, 1, 1], [], []>} : vector<16x64xbf16>, vector<64x32xbf16>, vector<16x32xf32> -> vector<16x32xf32>
    %c0_3 = arith.constant 0 : index
    %c0_4 = arith.constant 0 : index
    %9 = vector.load %arg2[%c0_3, %c0_4] : memref<16x32xf32, #tpu.memory_space<vmem>>, vector<16x32xf32>
    %10 = arith.addf %8, %9 : vector<16x32xf32>
    %c0_5 = arith.constant 0 : index
    %c0_6 = arith.constant 0 : index
    %11 = vector.load %arg4[%c0_5, %c0_6] : memref<1x32xf32, #tpu.memory_space<vmem>>, vector<1x32xf32>
    %c0_7 = arith.constant 0 : index
    %c0_8 = arith.constant 0 : index
    %12 = vector.load %arg5[%c0_7, %c0_8] : memref<1x32xf32, #tpu.memory_space<vmem>>, vector<1x32xf32>
    %cst_9 = arith.constant dense<0.000000e+00> : vector<16xf32>
    %13 = vector.multi_reduction <add>, %10, %cst_9 [1] : vector<16x32xf32> to vector<16xf32>
    %14 = vector.shape_cast %13 : vector<16xf32> to vector<16x1xf32>
    %cst_10 = arith.constant 3.200000e+01 : f32
    %15 = vector.broadcast %cst_10 : f32 to vector<16x1xf32>
    %16 = arith.divf %14, %15 : vector<16x1xf32>
    %17 = vector.broadcast %16 : vector<16x1xf32> to vector<16x32xf32>
    %18 = arith.subf %10, %17 : vector<16x32xf32>
    %19 = arith.mulf %18, %18 : vector<16x32xf32>
    %cst_11 = arith.constant dense<0.000000e+00> : vector<16xf32>
    %20 = vector.multi_reduction <add>, %19, %cst_11 [1] : vector<16x32xf32> to vector<16xf32>
    %21 = vector.shape_cast %20 : vector<16xf32> to vector<16x1xf32>
    %cst_12 = arith.constant 3.200000e+01 : f32
    %22 = vector.broadcast %cst_12 : f32 to vector<16x1xf32>
    %23 = arith.divf %21, %22 : vector<16x1xf32>
    %24 = vector.broadcast %16 : vector<16x1xf32> to vector<16x32xf32>
    %25 = arith.subf %10, %24 : vector<16x32xf32>
    %cst_13 = arith.constant 1.000000e-07 : f32
    %26 = vector.broadcast %cst_13 : f32 to vector<16x1xf32>
    %27 = arith.addf %23, %26 : vector<16x1xf32>
    %28 = math.rsqrt %27 : vector<16x1xf32>
    %29 = vector.broadcast %28 : vector<16x1xf32> to vector<16x32xf32>
    %30 = arith.mulf %25, %29 : vector<16x32xf32>
    %31 = vector.broadcast %11 : vector<1x32xf32> to vector<16x32xf32>
    %32 = arith.mulf %30, %31 : vector<16x32xf32>
    %33 = vector.broadcast %12 : vector<1x32xf32> to vector<16x32xf32>
    %34 = arith.addf %32, %33 : vector<16x32xf32>
    %c0_14 = arith.constant 0 : index
    %c0_15 = arith.constant 0 : index
    %35 = vector.load %arg1[%c0_14, %c0_15] : memref<16x16xf32, #tpu.memory_space<vmem>>, vector<16x16xf32>
    %36 = arith.truncf %34 : vector<16x32xf32> to vector<16x32xbf16>
    %c0_16 = arith.constant 0 : index
    %c0_17 = arith.constant 0 : index
    %c0_18 = arith.constant 0 : index
    %37 = vector.load %arg6[%c0_16, %c0_17, %c0_18] : memref<2x32x96xbf16, #tpu.memory_space<vmem>>, vector<1x32x96xbf16>
    %38 = vector.shape_cast %37 : vector<1x32x96xbf16> to vector<32x96xbf16>
    %cst_19 = arith.constant dense<0.000000e+00> : vector<16x96xf32>
    %39 = tpu.matmul %36, %38, %cst_19 {dimension_numbers = #tpu.dot_dimension_numbers<[1], [0], [0], [1], [0, 0, 1, 1], [], []>} : vector<16x32xbf16>, vector<32x96xbf16>, vector<16x96xf32> -> vector<16x96xf32>
    %c0_20 = arith.constant 0 : index
    %c0_21 = arith.constant 0 : index
    %c0_22 = arith.constant 0 : index
    %40 = vector.load %arg7[%c0_20, %c0_21, %c0_22] : memref<2x1x96xf32, #tpu.memory_space<vmem>>, vector<1x1x96xf32>
    %41 = vector.shape_cast %40 : vector<1x1x96xf32> to vector<1x96xf32>
    %42 = vector.broadcast %41 : vector<1x96xf32> to vector<16x96xf32>
    %43 = arith.addf %39, %42 : vector<16x96xf32>
    %44 = vector.extract_strided_slice %43 {offsets = [0, 0], sizes = [16, 8], strides = [1, 1]} : vector<16x96xf32> to vector<16x8xf32>
    %45 = vector.extract_strided_slice %43 {offsets = [0, 8], sizes = [16, 8], strides = [1, 1]} : vector<16x96xf32> to vector<16x8xf32>
    %46 = vector.extract_strided_slice %43 {offsets = [0, 16], sizes = [16, 8], strides = [1, 1]} : vector<16x96xf32> to vector<16x8xf32>
    %47 = vector.extract_strided_slice %43 {offsets = [0, 24], sizes = [16, 8], strides = [1, 1]} : vector<16x96xf32> to vector<16x8xf32>
    %48 = vector.shape_cast %44 : vector<16x8xf32> to vector<1x16x8xf32>
    %49 = vector.shape_cast %45 : vector<16x8xf32> to vector<1x16x8xf32>
    %50 = vector.shape_cast %46 : vector<16x8xf32> to vector<1x16x8xf32>
    %51 = vector.shape_cast %47 : vector<16x8xf32> to vector<1x16x8xf32>
    %52 = tpu.concatenate %48, %49, %50, %51 in 0 : vector<1x16x8xf32>, vector<1x16x8xf32>, vector<1x16x8xf32>, vector<1x16x8xf32> -> vector<4x16x8xf32>
    %53 = vector.extract_strided_slice %43 {offsets = [0, 32], sizes = [16, 8], strides = [1, 1]} : vector<16x96xf32> to vector<16x8xf32>
    %54 = vector.extract_strided_slice %43 {offsets = [0, 40], sizes = [16, 8], strides = [1, 1]} : vector<16x96xf32> to vector<16x8xf32>
    %55 = vector.extract_strided_slice %43 {offsets = [0, 48], sizes = [16, 8], strides = [1, 1]} : vector<16x96xf32> to vector<16x8xf32>
    %56 = vector.extract_strided_slice %43 {offsets = [0, 56], sizes = [16, 8], strides = [1, 1]} : vector<16x96xf32> to vector<16x8xf32>
    %57 = vector.shape_cast %53 : vector<16x8xf32> to vector<1x16x8xf32>
    %58 = vector.shape_cast %54 : vector<16x8xf32> to vector<1x16x8xf32>
    %59 = vector.shape_cast %55 : vector<16x8xf32> to vector<1x16x8xf32>
    %60 = vector.shape_cast %56 : vector<16x8xf32> to vector<1x16x8xf32>
    %61 = tpu.concatenate %57, %58, %59, %60 in 0 : vector<1x16x8xf32>, vector<1x16x8xf32>, vector<1x16x8xf32>, vector<1x16x8xf32> -> vector<4x16x8xf32>
    %62 = vector.extract_strided_slice %43 {offsets = [0, 64], sizes = [16, 8], strides = [1, 1]} : vector<16x96xf32> to vector<16x8xf32>
    %63 = vector.extract_strided_slice %43 {offsets = [0, 72], sizes = [16, 8], strides = [1, 1]} : vector<16x96xf32> to vector<16x8xf32>
    %64 = vector.extract_strided_slice %43 {offsets = [0, 80], sizes = [16, 8], strides = [1, 1]} : vector<16x96xf32> to vector<16x8xf32>
    %65 = vector.extract_strided_slice %43 {offsets = [0, 88], sizes = [16, 8], strides = [1, 1]} : vector<16x96xf32> to vector<16x8xf32>
    %66 = vector.shape_cast %62 : vector<16x8xf32> to vector<1x16x8xf32>
    %67 = vector.shape_cast %63 : vector<16x8xf32> to vector<1x16x8xf32>
    %68 = vector.shape_cast %64 : vector<16x8xf32> to vector<1x16x8xf32>
    %69 = vector.shape_cast %65 : vector<16x8xf32> to vector<1x16x8xf32>
    %70 = tpu.concatenate %66, %67, %68, %69 in 0 : vector<1x16x8xf32>, vector<1x16x8xf32>, vector<1x16x8xf32>, vector<1x16x8xf32> -> vector<4x16x8xf32>
    %71 = arith.truncf %52 : vector<4x16x8xf32> to vector<4x16x8xbf16>
    %72 = arith.truncf %61 : vector<4x16x8xf32> to vector<4x16x8xbf16>
    "tpu.trace_start"() <{level = 10 : i32, message = "hqd,hkd->hqk"}> : () -> ()
    %cst_23 = arith.constant dense<0.000000e+00> : vector<4x16x16xf32>
    %73 = tpu.matmul %71, %72, %cst_23 {dimension_numbers = #tpu.dot_dimension_numbers<[2], [2], [1], [1], [0, 0, 0, 1, 1, 1], [0], [0]>} : vector<4x16x8xbf16>, vector<4x16x8xbf16>, vector<4x16x16xf32> -> vector<4x16x16xf32>
    "tpu.trace_stop"() : () -> ()
    %74 = vector.shape_cast %35 : vector<16x16xf32> to vector<1x16x16xf32>
    %75 = vector.broadcast %74 : vector<1x16x16xf32> to vector<4x16x16xf32>
    %76 = arith.addf %73, %75 : vector<4x16x16xf32>
    %cst_24 = arith.constant dense<0xFF800000> : vector<4x16xf32>
    %77 = vector.multi_reduction <maximumf>, %76, %cst_24 [2] : vector<4x16x16xf32> to vector<4x16xf32>
    %78 = vector.shape_cast %77 : vector<4x16xf32> to vector<4x16x1xf32>
    %79 = vector.broadcast %78 : vector<4x16x1xf32> to vector<4x16x16xf32>
    %80 = arith.subf %76, %79 : vector<4x16x16xf32>
    %81 = math.exp %80 : vector<4x16x16xf32>
    %cst_25 = arith.constant dense<0.000000e+00> : vector<4x16xf32>
    %82 = vector.multi_reduction <add>, %81, %cst_25 [2] : vector<4x16x16xf32> to vector<4x16xf32>
    %83 = vector.shape_cast %82 : vector<4x16xf32> to vector<4x16x1xf32>
    %84 = tpu.reciprocal %83 {approx = true} : vector<4x16x1xf32> -> vector<4x16x1xf32>
    %85 = vector.broadcast %84 : vector<4x16x1xf32> to vector<4x16x16xf32>
    %86 = arith.mulf %81, %85 : vector<4x16x16xf32>
    %87 = arith.truncf %86 : vector<4x16x16xf32> to vector<4x16x16xbf16>
    %88 = arith.truncf %70 : vector<4x16x8xf32> to vector<4x16x8xbf16>
    "tpu.trace_start"() <{level = 10 : i32, message = "hqk,hkd->hqd"}> : () -> ()
    %cst_26 = arith.constant dense<0.000000e+00> : vector<4x16x8xf32>
    %89 = tpu.matmul %87, %88, %cst_26 {dimension_numbers = #tpu.dot_dimension_numbers<[2], [1], [1], [2], [0, 0, 0, 1, 1, 2], [0], [0]>} : vector<4x16x16xbf16>, vector<4x16x8xbf16>, vector<4x16x8xf32> -> vector<4x16x8xf32>
    "tpu.trace_stop"() : () -> ()
    %90 = vector.extract_strided_slice %89 {offsets = [0, 0, 0], sizes = [1, 16, 8], strides = [1, 1, 1]} : vector<4x16x8xf32> to vector<1x16x8xf32>
    %91 = vector.shape_cast %90 : vector<1x16x8xf32> to vector<16x8xf32>
    %92 = vector.extract_strided_slice %89 {offsets = [1, 0, 0], sizes = [1, 16, 8], strides = [1, 1, 1]} : vector<4x16x8xf32> to vector<1x16x8xf32>
    %93 = vector.shape_cast %92 : vector<1x16x8xf32> to vector<16x8xf32>
    %94 = vector.extract_strided_slice %89 {offsets = [2, 0, 0], sizes = [1, 16, 8], strides = [1, 1, 1]} : vector<4x16x8xf32> to vector<1x16x8xf32>
    %95 = vector.shape_cast %94 : vector<1x16x8xf32> to vector<16x8xf32>
    %96 = vector.extract_strided_slice %89 {offsets = [3, 0, 0], sizes = [1, 16, 8], strides = [1, 1, 1]} : vector<4x16x8xf32> to vector<1x16x8xf32>
    %97 = vector.shape_cast %96 : vector<1x16x8xf32> to vector<16x8xf32>
    %98 = tpu.concatenate %91, %93, %95, %97 in 1 : vector<16x8xf32>, vector<16x8xf32>, vector<16x8xf32>, vector<16x8xf32> -> vector<16x32xf32>
    %99 = arith.truncf %98 : vector<16x32xf32> to vector<16x32xbf16>
    %c0_27 = arith.constant 0 : index
    %c0_28 = arith.constant 0 : index
    %c0_29 = arith.constant 0 : index
    %100 = vector.load %arg8[%c0_27, %c0_28, %c0_29] : memref<2x32x32xbf16, #tpu.memory_space<vmem>>, vector<1x32x32xbf16>
    %101 = vector.shape_cast %100 : vector<1x32x32xbf16> to vector<32x32xbf16>
    %cst_30 = arith.constant dense<0.000000e+00> : vector<16x32xf32>
    %102 = tpu.matmul %99, %101, %cst_30 {dimension_numbers = #tpu.dot_dimension_numbers<[1], [0], [0], [1], [0, 0, 1, 1], [], []>} : vector<16x32xbf16>, vector<32x32xbf16>, vector<16x32xf32> -> vector<16x32xf32>
    %c0_31 = arith.constant 0 : index
    %c0_32 = arith.constant 0 : index
    %c0_33 = arith.constant 0 : index
    %103 = vector.load %arg9[%c0_31, %c0_32, %c0_33] : memref<2x1x32xf32, #tpu.memory_space<vmem>>, vector<1x1x32xf32>
    %104 = vector.shape_cast %103 : vector<1x1x32xf32> to vector<1x32xf32>
    %105 = vector.broadcast %104 : vector<1x32xf32> to vector<16x32xf32>
    %106 = arith.addf %102, %105 : vector<16x32xf32>
    %107 = arith.addf %106, %34 : vector<16x32xf32>
    %c0_34 = arith.constant 0 : index
    %c0_35 = arith.constant 0 : index
    %c0_36 = arith.constant 0 : index
    %108 = vector.load %arg10[%c0_34, %c0_35, %c0_36] : memref<2x1x32xf32, #tpu.memory_space<vmem>>, vector<1x1x32xf32>
    %109 = vector.shape_cast %108 : vector<1x1x32xf32> to vector<1x32xf32>
    %c0_37 = arith.constant 0 : index
    %c0_38 = arith.constant 0 : index
    %c0_39 = arith.constant 0 : index
    %110 = vector.load %arg11[%c0_37, %c0_38, %c0_39] : memref<2x1x32xf32, #tpu.memory_space<vmem>>, vector<1x1x32xf32>
    %111 = vector.shape_cast %110 : vector<1x1x32xf32> to vector<1x32xf32>
    %cst_40 = arith.constant dense<0.000000e+00> : vector<16xf32>
    %112 = vector.multi_reduction <add>, %107, %cst_40 [1] : vector<16x32xf32> to vector<16xf32>
    %113 = vector.shape_cast %112 : vector<16xf32> to vector<16x1xf32>
    %cst_41 = arith.constant 3.200000e+01 : f32
    %114 = vector.broadcast %cst_41 : f32 to vector<16x1xf32>
    %115 = arith.divf %113, %114 : vector<16x1xf32>
    %116 = vector.broadcast %115 : vector<16x1xf32> to vector<16x32xf32>
    %117 = arith.subf %107, %116 : vector<16x32xf32>
    %118 = arith.mulf %117, %117 : vector<16x32xf32>
    %cst_42 = arith.constant dense<0.000000e+00> : vector<16xf32>
    %119 = vector.multi_reduction <add>, %118, %cst_42 [1] : vector<16x32xf32> to vector<16xf32>
    %120 = vector.shape_cast %119 : vector<16xf32> to vector<16x1xf32>
    %cst_43 = arith.constant 3.200000e+01 : f32
    %121 = vector.broadcast %cst_43 : f32 to vector<16x1xf32>
    %122 = arith.divf %120, %121 : vector<16x1xf32>
    %123 = vector.broadcast %115 : vector<16x1xf32> to vector<16x32xf32>
    %124 = arith.subf %107, %123 : vector<16x32xf32>
    %cst_44 = arith.constant 1.000000e-07 : f32
    %125 = vector.broadcast %cst_44 : f32 to vector<16x1xf32>
    %126 = arith.addf %122, %125 : vector<16x1xf32>
    %127 = math.rsqrt %126 : vector<16x1xf32>
    %128 = vector.broadcast %127 : vector<16x1xf32> to vector<16x32xf32>
    %129 = arith.mulf %124, %128 : vector<16x32xf32>
    %130 = vector.broadcast %109 : vector<1x32xf32> to vector<16x32xf32>
    %131 = arith.mulf %129, %130 : vector<16x32xf32>
    %132 = vector.broadcast %111 : vector<1x32xf32> to vector<16x32xf32>
    %133 = arith.addf %131, %132 : vector<16x32xf32>
    %134 = arith.truncf %133 : vector<16x32xf32> to vector<16x32xbf16>
    %c0_45 = arith.constant 0 : index
    %c0_46 = arith.constant 0 : index
    %c0_47 = arith.constant 0 : index
    %135 = vector.load %arg12[%c0_45, %c0_46, %c0_47] : memref<2x32x64xbf16, #tpu.memory_space<vmem>>, vector<1x32x64xbf16>
    %136 = vector.shape_cast %135 : vector<1x32x64xbf16> to vector<32x64xbf16>
    %cst_48 = arith.constant dense<0.000000e+00> : vector<16x64xf32>
    %137 = tpu.matmul %134, %136, %cst_48 {dimension_numbers = #tpu.dot_dimension_numbers<[1], [0], [0], [1], [0, 0, 1, 1], [], []>} : vector<16x32xbf16>, vector<32x64xbf16>, vector<16x64xf32> -> vector<16x64xf32>
    %c0_49 = arith.constant 0 : index
    %c0_50 = arith.constant 0 : index
    %c0_51 = arith.constant 0 : index
    %138 = vector.load %arg13[%c0_49, %c0_50, %c0_51] : memref<2x1x64xf32, #tpu.memory_space<vmem>>, vector<1x1x64xf32>
    %139 = vector.shape_cast %138 : vector<1x1x64xf32> to vector<1x64xf32>
    %140 = vector.broadcast %139 : vector<1x64xf32> to vector<16x64xf32>
    %141 = arith.addf %137, %140 : vector<16x64xf32>
    %cst_52 = arith.constant 5.000000e-01 : f32
    %142 = vector.broadcast %cst_52 : f32 to vector<16x64xf32>
    %143 = arith.mulf %142, %141 : vector<16x64xf32>
    %cst_53 = arith.constant 4.471500e-02 : f32
    %144 = vector.broadcast %cst_53 : f32 to vector<16x64xf32>
    %145 = arith.mulf %144, %141 : vector<16x64xf32>
    %146 = arith.mulf %145, %141 : vector<16x64xf32>
    %147 = arith.mulf %146, %141 : vector<16x64xf32>
    %148 = arith.addf %141, %147 : vector<16x64xf32>
    %cst_54 = arith.constant 0.797884583 : f32
    %149 = vector.broadcast %cst_54 : f32 to vector<16x64xf32>
    %150 = arith.mulf %149, %148 : vector<16x64xf32>
    %151 = math.tanh %150 : vector<16x64xf32>
    %cst_55 = arith.constant 1.000000e+00 : f32
    %152 = vector.broadcast %cst_55 : f32 to vector<16x64xf32>
    %153 = arith.addf %152, %151 : vector<16x64xf32>
    %154 = arith.mulf %143, %153 : vector<16x64xf32>
    %155 = arith.truncf %154 : vector<16x64xf32> to vector<16x64xbf16>
    %c0_56 = arith.constant 0 : index
    %c0_57 = arith.constant 0 : index
    %c0_58 = arith.constant 0 : index
    %156 = vector.load %arg14[%c0_56, %c0_57, %c0_58] : memref<2x64x32xbf16, #tpu.memory_space<vmem>>, vector<1x64x32xbf16>
    %157 = vector.shape_cast %156 : vector<1x64x32xbf16> to vector<64x32xbf16>
    %cst_59 = arith.constant dense<0.000000e+00> : vector<16x32xf32>
    %158 = tpu.matmul %155, %157, %cst_59 {dimension_numbers = #tpu.dot_dimension_numbers<[1], [0], [0], [1], [0, 0, 1, 1], [], []>} : vector<16x64xbf16>, vector<64x32xbf16>, vector<16x32xf32> -> vector<16x32xf32>
    %c0_60 = arith.constant 0 : index
    %c0_61 = arith.constant 0 : index
    %c0_62 = arith.constant 0 : index
    %159 = vector.load %arg15[%c0_60, %c0_61, %c0_62] : memref<2x1x32xf32, #tpu.memory_space<vmem>>, vector<1x1x32xf32>
    %160 = vector.shape_cast %159 : vector<1x1x32xf32> to vector<1x32xf32>
    %161 = vector.broadcast %160 : vector<1x32xf32> to vector<16x32xf32>
    %162 = arith.addf %158, %161 : vector<16x32xf32>
    %163 = arith.addf %162, %133 : vector<16x32xf32>
    %c0_63 = arith.constant 0 : index
    %c0_64 = arith.constant 0 : index
    %c0_65 = arith.constant 0 : index
    %164 = vector.load %arg16[%c0_63, %c0_64, %c0_65] : memref<2x1x32xf32, #tpu.memory_space<vmem>>, vector<1x1x32xf32>
    %165 = vector.shape_cast %164 : vector<1x1x32xf32> to vector<1x32xf32>
    %c0_66 = arith.constant 0 : index
    %c0_67 = arith.constant 0 : index
    %c0_68 = arith.constant 0 : index
    %166 = vector.load %arg17[%c0_66, %c0_67, %c0_68] : memref<2x1x32xf32, #tpu.memory_space<vmem>>, vector<1x1x32xf32>
    %167 = vector.shape_cast %166 : vector<1x1x32xf32> to vector<1x32xf32>
    %cst_69 = arith.constant dense<0.000000e+00> : vector<16xf32>
    %168 = vector.multi_reduction <add>, %163, %cst_69 [1] : vector<16x32xf32> to vector<16xf32>
    %169 = vector.shape_cast %168 : vector<16xf32> to vector<16x1xf32>
    %cst_70 = arith.constant 3.200000e+01 : f32
    %170 = vector.broadcast %cst_70 : f32 to vector<16x1xf32>
    %171 = arith.divf %169, %170 : vector<16x1xf32>
    %172 = vector.broadcast %171 : vector<16x1xf32> to vector<16x32xf32>
    %173 = arith.subf %163, %172 : vector<16x32xf32>
    %174 = arith.mulf %173, %173 : vector<16x32xf32>
    %cst_71 = arith.constant dense<0.000000e+00> : vector<16xf32>
    %175 = vector.multi_reduction <add>, %174, %cst_71 [1] : vector<16x32xf32> to vector<16xf32>
    %176 = vector.shape_cast %175 : vector<16xf32> to vector<16x1xf32>
    %cst_72 = arith.constant 3.200000e+01 : f32
    %177 = vector.broadcast %cst_72 : f32 to vector<16x1xf32>
    %178 = arith.divf %176, %177 : vector<16x1xf32>
    %179 = vector.broadcast %171 : vector<16x1xf32> to vector<16x32xf32>
    %180 = arith.subf %163, %179 : vector<16x32xf32>
    %cst_73 = arith.constant 1.000000e-07 : f32
    %181 = vector.broadcast %cst_73 : f32 to vector<16x1xf32>
    %182 = arith.addf %178, %181 : vector<16x1xf32>
    %183 = math.rsqrt %182 : vector<16x1xf32>
    %184 = vector.broadcast %183 : vector<16x1xf32> to vector<16x32xf32>
    %185 = arith.mulf %180, %184 : vector<16x32xf32>
    %186 = vector.broadcast %165 : vector<1x32xf32> to vector<16x32xf32>
    %187 = arith.mulf %185, %186 : vector<16x32xf32>
    %188 = vector.broadcast %167 : vector<1x32xf32> to vector<16x32xf32>
    %189 = arith.addf %187, %188 : vector<16x32xf32>
    %190 = arith.truncf %189 : vector<16x32xf32> to vector<16x32xbf16>
    %c1 = arith.constant 1 : index
    %c0_74 = arith.constant 0 : index
    %c0_75 = arith.constant 0 : index
    %191 = vector.load %arg6[%c1, %c0_74, %c0_75] : memref<2x32x96xbf16, #tpu.memory_space<vmem>>, vector<1x32x96xbf16>
    %192 = vector.shape_cast %191 : vector<1x32x96xbf16> to vector<32x96xbf16>
    %cst_76 = arith.constant dense<0.000000e+00> : vector<16x96xf32>
    %193 = tpu.matmul %190, %192, %cst_76 {dimension_numbers = #tpu.dot_dimension_numbers<[1], [0], [0], [1], [0, 0, 1, 1], [], []>} : vector<16x32xbf16>, vector<32x96xbf16>, vector<16x96xf32> -> vector<16x96xf32>
    %c1_77 = arith.constant 1 : index
    %c0_78 = arith.constant 0 : index
    %c0_79 = arith.constant 0 : index
    %194 = vector.load %arg7[%c1_77, %c0_78, %c0_79] : memref<2x1x96xf32, #tpu.memory_space<vmem>>, vector<1x1x96xf32>
    %195 = vector.shape_cast %194 : vector<1x1x96xf32> to vector<1x96xf32>
    %196 = vector.broadcast %195 : vector<1x96xf32> to vector<16x96xf32>
    %197 = arith.addf %193, %196 : vector<16x96xf32>
    %198 = vector.extract_strided_slice %197 {offsets = [0, 0], sizes = [16, 8], strides = [1, 1]} : vector<16x96xf32> to vector<16x8xf32>
    %199 = vector.extract_strided_slice %197 {offsets = [0, 8], sizes = [16, 8], strides = [1, 1]} : vector<16x96xf32> to vector<16x8xf32>
    %200 = vector.extract_strided_slice %197 {offsets = [0, 16], sizes = [16, 8], strides = [1, 1]} : vector<16x96xf32> to vector<16x8xf32>
    %201 = vector.extract_strided_slice %197 {offsets = [0, 24], sizes = [16, 8], strides = [1, 1]} : vector<16x96xf32> to vector<16x8xf32>
    %202 = vector.shape_cast %198 : vector<16x8xf32> to vector<1x16x8xf32>
    %203 = vector.shape_cast %199 : vector<16x8xf32> to vector<1x16x8xf32>
    %204 = vector.shape_cast %200 : vector<16x8xf32> to vector<1x16x8xf32>
    %205 = vector.shape_cast %201 : vector<16x8xf32> to vector<1x16x8xf32>
    %206 = tpu.concatenate %202, %203, %204, %205 in 0 : vector<1x16x8xf32>, vector<1x16x8xf32>, vector<1x16x8xf32>, vector<1x16x8xf32> -> vector<4x16x8xf32>
    %207 = vector.extract_strided_slice %197 {offsets = [0, 32], sizes = [16, 8], strides = [1, 1]} : vector<16x96xf32> to vector<16x8xf32>
    %208 = vector.extract_strided_slice %197 {offsets = [0, 40], sizes = [16, 8], strides = [1, 1]} : vector<16x96xf32> to vector<16x8xf32>
    %209 = vector.extract_strided_slice %197 {offsets = [0, 48], sizes = [16, 8], strides = [1, 1]} : vector<16x96xf32> to vector<16x8xf32>
    %210 = vector.extract_strided_slice %197 {offsets = [0, 56], sizes = [16, 8], strides = [1, 1]} : vector<16x96xf32> to vector<16x8xf32>
    %211 = vector.shape_cast %207 : vector<16x8xf32> to vector<1x16x8xf32>
    %212 = vector.shape_cast %208 : vector<16x8xf32> to vector<1x16x8xf32>
    %213 = vector.shape_cast %209 : vector<16x8xf32> to vector<1x16x8xf32>
    %214 = vector.shape_cast %210 : vector<16x8xf32> to vector<1x16x8xf32>
    %215 = tpu.concatenate %211, %212, %213, %214 in 0 : vector<1x16x8xf32>, vector<1x16x8xf32>, vector<1x16x8xf32>, vector<1x16x8xf32> -> vector<4x16x8xf32>
    %216 = vector.extract_strided_slice %197 {offsets = [0, 64], sizes = [16, 8], strides = [1, 1]} : vector<16x96xf32> to vector<16x8xf32>
    %217 = vector.extract_strided_slice %197 {offsets = [0, 72], sizes = [16, 8], strides = [1, 1]} : vector<16x96xf32> to vector<16x8xf32>
    %218 = vector.extract_strided_slice %197 {offsets = [0, 80], sizes = [16, 8], strides = [1, 1]} : vector<16x96xf32> to vector<16x8xf32>
    %219 = vector.extract_strided_slice %197 {offsets = [0, 88], sizes = [16, 8], strides = [1, 1]} : vector<16x96xf32> to vector<16x8xf32>
    %220 = vector.shape_cast %216 : vector<16x8xf32> to vector<1x16x8xf32>
    %221 = vector.shape_cast %217 : vector<16x8xf32> to vector<1x16x8xf32>
    %222 = vector.shape_cast %218 : vector<16x8xf32> to vector<1x16x8xf32>
    %223 = vector.shape_cast %219 : vector<16x8xf32> to vector<1x16x8xf32>
    %224 = tpu.concatenate %220, %221, %222, %223 in 0 : vector<1x16x8xf32>, vector<1x16x8xf32>, vector<1x16x8xf32>, vector<1x16x8xf32> -> vector<4x16x8xf32>
    %225 = arith.truncf %206 : vector<4x16x8xf32> to vector<4x16x8xbf16>
    %226 = arith.truncf %215 : vector<4x16x8xf32> to vector<4x16x8xbf16>
    "tpu.trace_start"() <{level = 10 : i32, message = "hqd,hkd->hqk"}> : () -> ()
    %cst_80 = arith.constant dense<0.000000e+00> : vector<4x16x16xf32>
    %227 = tpu.matmul %225, %226, %cst_80 {dimension_numbers = #tpu.dot_dimension_numbers<[2], [2], [1], [1], [0, 0, 0, 1, 1, 1], [0], [0]>} : vector<4x16x8xbf16>, vector<4x16x8xbf16>, vector<4x16x16xf32> -> vector<4x16x16xf32>
    "tpu.trace_stop"() : () -> ()
    %228 = vector.shape_cast %35 : vector<16x16xf32> to vector<1x16x16xf32>
    %229 = vector.broadcast %228 : vector<1x16x16xf32> to vector<4x16x16xf32>
    %230 = arith.addf %227, %229 : vector<4x16x16xf32>
    %cst_81 = arith.constant dense<0xFF800000> : vector<4x16xf32>
    %231 = vector.multi_reduction <maximumf>, %230, %cst_81 [2] : vector<4x16x16xf32> to vector<4x16xf32>
    %232 = vector.shape_cast %231 : vector<4x16xf32> to vector<4x16x1xf32>
    %233 = vector.broadcast %232 : vector<4x16x1xf32> to vector<4x16x16xf32>
    %234 = arith.subf %230, %233 : vector<4x16x16xf32>
    %235 = math.exp %234 : vector<4x16x16xf32>
    %cst_82 = arith.constant dense<0.000000e+00> : vector<4x16xf32>
    %236 = vector.multi_reduction <add>, %235, %cst_82 [2] : vector<4x16x16xf32> to vector<4x16xf32>
    %237 = vector.shape_cast %236 : vector<4x16xf32> to vector<4x16x1xf32>
    %238 = tpu.reciprocal %237 {approx = true} : vector<4x16x1xf32> -> vector<4x16x1xf32>
    %239 = vector.broadcast %238 : vector<4x16x1xf32> to vector<4x16x16xf32>
    %240 = arith.mulf %235, %239 : vector<4x16x16xf32>
    %241 = arith.truncf %240 : vector<4x16x16xf32> to vector<4x16x16xbf16>
    %242 = arith.truncf %224 : vector<4x16x8xf32> to vector<4x16x8xbf16>
    "tpu.trace_start"() <{level = 10 : i32, message = "hqk,hkd->hqd"}> : () -> ()
    %cst_83 = arith.constant dense<0.000000e+00> : vector<4x16x8xf32>
    %243 = tpu.matmul %241, %242, %cst_83 {dimension_numbers = #tpu.dot_dimension_numbers<[2], [1], [1], [2], [0, 0, 0, 1, 1, 2], [0], [0]>} : vector<4x16x16xbf16>, vector<4x16x8xbf16>, vector<4x16x8xf32> -> vector<4x16x8xf32>
    "tpu.trace_stop"() : () -> ()
    %244 = vector.extract_strided_slice %243 {offsets = [0, 0, 0], sizes = [1, 16, 8], strides = [1, 1, 1]} : vector<4x16x8xf32> to vector<1x16x8xf32>
    %245 = vector.shape_cast %244 : vector<1x16x8xf32> to vector<16x8xf32>
    %246 = vector.extract_strided_slice %243 {offsets = [1, 0, 0], sizes = [1, 16, 8], strides = [1, 1, 1]} : vector<4x16x8xf32> to vector<1x16x8xf32>
    %247 = vector.shape_cast %246 : vector<1x16x8xf32> to vector<16x8xf32>
    %248 = vector.extract_strided_slice %243 {offsets = [2, 0, 0], sizes = [1, 16, 8], strides = [1, 1, 1]} : vector<4x16x8xf32> to vector<1x16x8xf32>
    %249 = vector.shape_cast %248 : vector<1x16x8xf32> to vector<16x8xf32>
    %250 = vector.extract_strided_slice %243 {offsets = [3, 0, 0], sizes = [1, 16, 8], strides = [1, 1, 1]} : vector<4x16x8xf32> to vector<1x16x8xf32>
    %251 = vector.shape_cast %250 : vector<1x16x8xf32> to vector<16x8xf32>
    %252 = tpu.concatenate %245, %247, %249, %251 in 1 : vector<16x8xf32>, vector<16x8xf32>, vector<16x8xf32>, vector<16x8xf32> -> vector<16x32xf32>
    %253 = arith.truncf %252 : vector<16x32xf32> to vector<16x32xbf16>
    %c1_84 = arith.constant 1 : index
    %c0_85 = arith.constant 0 : index
    %c0_86 = arith.constant 0 : index
    %254 = vector.load %arg8[%c1_84, %c0_85, %c0_86] : memref<2x32x32xbf16, #tpu.memory_space<vmem>>, vector<1x32x32xbf16>
    %255 = vector.shape_cast %254 : vector<1x32x32xbf16> to vector<32x32xbf16>
    %cst_87 = arith.constant dense<0.000000e+00> : vector<16x32xf32>
    %256 = tpu.matmul %253, %255, %cst_87 {dimension_numbers = #tpu.dot_dimension_numbers<[1], [0], [0], [1], [0, 0, 1, 1], [], []>} : vector<16x32xbf16>, vector<32x32xbf16>, vector<16x32xf32> -> vector<16x32xf32>
    %c1_88 = arith.constant 1 : index
    %c0_89 = arith.constant 0 : index
    %c0_90 = arith.constant 0 : index
    %257 = vector.load %arg9[%c1_88, %c0_89, %c0_90] : memref<2x1x32xf32, #tpu.memory_space<vmem>>, vector<1x1x32xf32>
    %258 = vector.shape_cast %257 : vector<1x1x32xf32> to vector<1x32xf32>
    %259 = vector.broadcast %258 : vector<1x32xf32> to vector<16x32xf32>
    %260 = arith.addf %256, %259 : vector<16x32xf32>
    %261 = arith.addf %260, %189 : vector<16x32xf32>
    %c1_91 = arith.constant 1 : index
    %c0_92 = arith.constant 0 : index
    %c0_93 = arith.constant 0 : index
    %262 = vector.load %arg10[%c1_91, %c0_92, %c0_93] : memref<2x1x32xf32, #tpu.memory_space<vmem>>, vector<1x1x32xf32>
    %263 = vector.shape_cast %262 : vector<1x1x32xf32> to vector<1x32xf32>
    %c1_94 = arith.constant 1 : index
    %c0_95 = arith.constant 0 : index
    %c0_96 = arith.constant 0 : index
    %264 = vector.load %arg11[%c1_94, %c0_95, %c0_96] : memref<2x1x32xf32, #tpu.memory_space<vmem>>, vector<1x1x32xf32>
    %265 = vector.shape_cast %264 : vector<1x1x32xf32> to vector<1x32xf32>
    %cst_97 = arith.constant dense<0.000000e+00> : vector<16xf32>
    %266 = vector.multi_reduction <add>, %261, %cst_97 [1] : vector<16x32xf32> to vector<16xf32>
    %267 = vector.shape_cast %266 : vector<16xf32> to vector<16x1xf32>
    %cst_98 = arith.constant 3.200000e+01 : f32
    %268 = vector.broadcast %cst_98 : f32 to vector<16x1xf32>
    %269 = arith.divf %267, %268 : vector<16x1xf32>
    %270 = vector.broadcast %269 : vector<16x1xf32> to vector<16x32xf32>
    %271 = arith.subf %261, %270 : vector<16x32xf32>
    %272 = arith.mulf %271, %271 : vector<16x32xf32>
    %cst_99 = arith.constant dense<0.000000e+00> : vector<16xf32>
    %273 = vector.multi_reduction <add>, %272, %cst_99 [1] : vector<16x32xf32> to vector<16xf32>
    %274 = vector.shape_cast %273 : vector<16xf32> to vector<16x1xf32>
    %cst_100 = arith.constant 3.200000e+01 : f32
    %275 = vector.broadcast %cst_100 : f32 to vector<16x1xf32>
    %276 = arith.divf %274, %275 : vector<16x1xf32>
    %277 = vector.broadcast %269 : vector<16x1xf32> to vector<16x32xf32>
    %278 = arith.subf %261, %277 : vector<16x32xf32>
    %cst_101 = arith.constant 1.000000e-07 : f32
    %279 = vector.broadcast %cst_101 : f32 to vector<16x1xf32>
    %280 = arith.addf %276, %279 : vector<16x1xf32>
    %281 = math.rsqrt %280 : vector<16x1xf32>
    %282 = vector.broadcast %281 : vector<16x1xf32> to vector<16x32xf32>
    %283 = arith.mulf %278, %282 : vector<16x32xf32>
    %284 = vector.broadcast %263 : vector<1x32xf32> to vector<16x32xf32>
    %285 = arith.mulf %283, %284 : vector<16x32xf32>
    %286 = vector.broadcast %265 : vector<1x32xf32> to vector<16x32xf32>
    %287 = arith.addf %285, %286 : vector<16x32xf32>
    %288 = arith.truncf %287 : vector<16x32xf32> to vector<16x32xbf16>
    %c1_102 = arith.constant 1 : index
    %c0_103 = arith.constant 0 : index
    %c0_104 = arith.constant 0 : index
    %289 = vector.load %arg12[%c1_102, %c0_103, %c0_104] : memref<2x32x64xbf16, #tpu.memory_space<vmem>>, vector<1x32x64xbf16>
    %290 = vector.shape_cast %289 : vector<1x32x64xbf16> to vector<32x64xbf16>
    %cst_105 = arith.constant dense<0.000000e+00> : vector<16x64xf32>
    %291 = tpu.matmul %288, %290, %cst_105 {dimension_numbers = #tpu.dot_dimension_numbers<[1], [0], [0], [1], [0, 0, 1, 1], [], []>} : vector<16x32xbf16>, vector<32x64xbf16>, vector<16x64xf32> -> vector<16x64xf32>
    %c1_106 = arith.constant 1 : index
    %c0_107 = arith.constant 0 : index
    %c0_108 = arith.constant 0 : index
    %292 = vector.load %arg13[%c1_106, %c0_107, %c0_108] : memref<2x1x64xf32, #tpu.memory_space<vmem>>, vector<1x1x64xf32>
    %293 = vector.shape_cast %292 : vector<1x1x64xf32> to vector<1x64xf32>
    %294 = vector.broadcast %293 : vector<1x64xf32> to vector<16x64xf32>
    %295 = arith.addf %291, %294 : vector<16x64xf32>
    %cst_109 = arith.constant 5.000000e-01 : f32
    %296 = vector.broadcast %cst_109 : f32 to vector<16x64xf32>
    %297 = arith.mulf %296, %295 : vector<16x64xf32>
    %cst_110 = arith.constant 4.471500e-02 : f32
    %298 = vector.broadcast %cst_110 : f32 to vector<16x64xf32>
    %299 = arith.mulf %298, %295 : vector<16x64xf32>
    %300 = arith.mulf %299, %295 : vector<16x64xf32>
    %301 = arith.mulf %300, %295 : vector<16x64xf32>
    %302 = arith.addf %295, %301 : vector<16x64xf32>
    %cst_111 = arith.constant 0.797884583 : f32
    %303 = vector.broadcast %cst_111 : f32 to vector<16x64xf32>
    %304 = arith.mulf %303, %302 : vector<16x64xf32>
    %305 = math.tanh %304 : vector<16x64xf32>
    %cst_112 = arith.constant 1.000000e+00 : f32
    %306 = vector.broadcast %cst_112 : f32 to vector<16x64xf32>
    %307 = arith.addf %306, %305 : vector<16x64xf32>
    %308 = arith.mulf %297, %307 : vector<16x64xf32>
    %309 = arith.truncf %308 : vector<16x64xf32> to vector<16x64xbf16>
    %c1_113 = arith.constant 1 : index
    %c0_114 = arith.constant 0 : index
    %c0_115 = arith.constant 0 : index
    %310 = vector.load %arg14[%c1_113, %c0_114, %c0_115] : memref<2x64x32xbf16, #tpu.memory_space<vmem>>, vector<1x64x32xbf16>
    %311 = vector.shape_cast %310 : vector<1x64x32xbf16> to vector<64x32xbf16>
    %cst_116 = arith.constant dense<0.000000e+00> : vector<16x32xf32>
    %312 = tpu.matmul %309, %311, %cst_116 {dimension_numbers = #tpu.dot_dimension_numbers<[1], [0], [0], [1], [0, 0, 1, 1], [], []>} : vector<16x64xbf16>, vector<64x32xbf16>, vector<16x32xf32> -> vector<16x32xf32>
    %c1_117 = arith.constant 1 : index
    %c0_118 = arith.constant 0 : index
    %c0_119 = arith.constant 0 : index
    %313 = vector.load %arg15[%c1_117, %c0_118, %c0_119] : memref<2x1x32xf32, #tpu.memory_space<vmem>>, vector<1x1x32xf32>
    %314 = vector.shape_cast %313 : vector<1x1x32xf32> to vector<1x32xf32>
    %315 = vector.broadcast %314 : vector<1x32xf32> to vector<16x32xf32>
    %316 = arith.addf %312, %315 : vector<16x32xf32>
    %317 = arith.addf %316, %287 : vector<16x32xf32>
    %c1_120 = arith.constant 1 : index
    %c0_121 = arith.constant 0 : index
    %c0_122 = arith.constant 0 : index
    %318 = vector.load %arg16[%c1_120, %c0_121, %c0_122] : memref<2x1x32xf32, #tpu.memory_space<vmem>>, vector<1x1x32xf32>
    %319 = vector.shape_cast %318 : vector<1x1x32xf32> to vector<1x32xf32>
    %c1_123 = arith.constant 1 : index
    %c0_124 = arith.constant 0 : index
    %c0_125 = arith.constant 0 : index
    %320 = vector.load %arg17[%c1_123, %c0_124, %c0_125] : memref<2x1x32xf32, #tpu.memory_space<vmem>>, vector<1x1x32xf32>
    %321 = vector.shape_cast %320 : vector<1x1x32xf32> to vector<1x32xf32>
    %cst_126 = arith.constant dense<0.000000e+00> : vector<16xf32>
    %322 = vector.multi_reduction <add>, %317, %cst_126 [1] : vector<16x32xf32> to vector<16xf32>
    %323 = vector.shape_cast %322 : vector<16xf32> to vector<16x1xf32>
    %cst_127 = arith.constant 3.200000e+01 : f32
    %324 = vector.broadcast %cst_127 : f32 to vector<16x1xf32>
    %325 = arith.divf %323, %324 : vector<16x1xf32>
    %326 = vector.broadcast %325 : vector<16x1xf32> to vector<16x32xf32>
    %327 = arith.subf %317, %326 : vector<16x32xf32>
    %328 = arith.mulf %327, %327 : vector<16x32xf32>
    %cst_128 = arith.constant dense<0.000000e+00> : vector<16xf32>
    %329 = vector.multi_reduction <add>, %328, %cst_128 [1] : vector<16x32xf32> to vector<16xf32>
    %330 = vector.shape_cast %329 : vector<16xf32> to vector<16x1xf32>
    %cst_129 = arith.constant 3.200000e+01 : f32
    %331 = vector.broadcast %cst_129 : f32 to vector<16x1xf32>
    %332 = arith.divf %330, %331 : vector<16x1xf32>
    %333 = vector.broadcast %325 : vector<16x1xf32> to vector<16x32xf32>
    %334 = arith.subf %317, %333 : vector<16x32xf32>
    %cst_130 = arith.constant 1.000000e-07 : f32
    %335 = vector.broadcast %cst_130 : f32 to vector<16x1xf32>
    %336 = arith.addf %332, %335 : vector<16x1xf32>
    %337 = math.rsqrt %336 : vector<16x1xf32>
    %338 = vector.broadcast %337 : vector<16x1xf32> to vector<16x32xf32>
    %339 = arith.mulf %334, %338 : vector<16x32xf32>
    %340 = vector.broadcast %319 : vector<1x32xf32> to vector<16x32xf32>
    %341 = arith.mulf %339, %340 : vector<16x32xf32>
    %342 = vector.broadcast %321 : vector<1x32xf32> to vector<16x32xf32>
    %343 = arith.addf %341, %342 : vector<16x32xf32>
    %344 = tpu.iota {dimensions = array<i32: 1>} : vector<2x16xi32>
    %345 = tpu.iota {dimensions = array<i32: 0>} : vector<2x16xi32>
    %c8_i32 = arith.constant 8 : i32
    %346 = vector.broadcast %c8_i32 : i32 to vector<2x16xi32>
    %347 = arith.muli %345, %346 : vector<2x16xi32>
    %348 = arith.cmpi eq, %344, %347 : vector<2x16xi32>
    %349 = arith.extui %348 : vector<2x16xi1> to vector<2x16xi32>
    %350 = arith.sitofp %349 : vector<2x16xi32> to vector<2x16xf32>
    %351 = arith.truncf %350 : vector<2x16xf32> to vector<2x16xbf16>
    %352 = arith.truncf %343 : vector<16x32xf32> to vector<16x32xbf16>
    %cst_131 = arith.constant dense<0.000000e+00> : vector<2x32xf32>
    %353 = tpu.matmul %351, %352, %cst_131 {dimension_numbers = #tpu.dot_dimension_numbers<[1], [0], [0], [1], [0, 0, 1, 1], [], []>} : vector<2x16xbf16>, vector<16x32xbf16>, vector<2x32xf32> -> vector<2x32xf32>
    %354 = arith.truncf %353 : vector<2x32xf32> to vector<2x32xbf16>
    %c0_132 = arith.constant 0 : index
    %c0_133 = arith.constant 0 : index
    %355 = vector.load %arg18[%c0_132, %c0_133] : memref<32x32xbf16, #tpu.memory_space<vmem>>, vector<32x32xbf16>
    %cst_134 = arith.constant dense<0.000000e+00> : vector<2x32xf32>
    %356 = tpu.matmul %354, %355, %cst_134 {dimension_numbers = #tpu.dot_dimension_numbers<[1], [0], [0], [1], [0, 0, 1, 1], [], []>} : vector<2x32xbf16>, vector<32x32xbf16>, vector<2x32xf32> -> vector<2x32xf32>
    %c0_135 = arith.constant 0 : index
    %c0_136 = arith.constant 0 : index
    %357 = vector.load %arg19[%c0_135, %c0_136] : memref<1x32xf32, #tpu.memory_space<vmem>>, vector<1x32xf32>
    %358 = vector.broadcast %357 : vector<1x32xf32> to vector<2x32xf32>
    %359 = arith.addf %356, %358 : vector<2x32xf32>
    %cst_137 = arith.constant 5.000000e-01 : f32
    %360 = vector.broadcast %cst_137 : f32 to vector<2x32xf32>
    %361 = arith.mulf %360, %359 : vector<2x32xf32>
    %cst_138 = arith.constant 4.471500e-02 : f32
    %362 = vector.broadcast %cst_138 : f32 to vector<2x32xf32>
    %363 = arith.mulf %362, %359 : vector<2x32xf32>
    %364 = arith.mulf %363, %359 : vector<2x32xf32>
    %365 = arith.mulf %364, %359 : vector<2x32xf32>
    %366 = arith.addf %359, %365 : vector<2x32xf32>
    %cst_139 = arith.constant 0.797884583 : f32
    %367 = vector.broadcast %cst_139 : f32 to vector<2x32xf32>
    %368 = arith.mulf %367, %366 : vector<2x32xf32>
    %369 = math.tanh %368 : vector<2x32xf32>
    %cst_140 = arith.constant 1.000000e+00 : f32
    %370 = vector.broadcast %cst_140 : f32 to vector<2x32xf32>
    %371 = arith.addf %370, %369 : vector<2x32xf32>
    %372 = arith.mulf %361, %371 : vector<2x32xf32>
    %373 = arith.truncf %372 : vector<2x32xf32> to vector<2x32xbf16>
    %c0_141 = arith.constant 0 : index
    %c0_142 = arith.constant 0 : index
    %374 = vector.load %arg20[%c0_141, %c0_142] : memref<32x128xbf16, #tpu.memory_space<vmem>>, vector<32x128xbf16>
    %cst_143 = arith.constant dense<0.000000e+00> : vector<2x128xf32>
    %375 = tpu.matmul %373, %374, %cst_143 {dimension_numbers = #tpu.dot_dimension_numbers<[1], [0], [0], [1], [0, 0, 1, 1], [], []>} : vector<2x32xbf16>, vector<32x128xbf16>, vector<2x128xf32> -> vector<2x128xf32>
    %c0_144 = arith.constant 0 : index
    %c0_145 = arith.constant 0 : index
    %376 = vector.load %arg21[%c0_144, %c0_145] : memref<1x128xf32, #tpu.memory_space<vmem>>, vector<1x128xf32>
    %377 = vector.broadcast %376 : vector<1x128xf32> to vector<2x128xf32>
    %378 = arith.addf %375, %377 : vector<2x128xf32>
    %379 = vector.extract_strided_slice %378 {offsets = [0, 0], sizes = [2, 3], strides = [1, 1]} : vector<2x128xf32> to vector<2x3xf32>
    %cst_146 = arith.constant dense<0xFF800000> : vector<2xf32>
    %380 = vector.multi_reduction <maximumf>, %379, %cst_146 [1] : vector<2x3xf32> to vector<2xf32>
    %381 = vector.shape_cast %380 : vector<2xf32> to vector<2x1xf32>
    %382 = vector.broadcast %381 : vector<2x1xf32> to vector<2x3xf32>
    %383 = arith.subf %379, %382 : vector<2x3xf32>
    %384 = math.exp %383 : vector<2x3xf32>
    %cst_147 = arith.constant dense<0.000000e+00> : vector<2xf32>
    %385 = vector.multi_reduction <add>, %384, %cst_147 [1] : vector<2x3xf32> to vector<2xf32>
    %386 = vector.shape_cast %385 : vector<2xf32> to vector<2x1xf32>
    %387 = math.log %386 : vector<2x1xf32>
    %388 = arith.addf %381, %387 : vector<2x1xf32>
    %389 = vector.broadcast %388 : vector<2x1xf32> to vector<2x3xf32>
    %390 = arith.subf %379, %389 : vector<2x3xf32>
    %c0_148 = arith.constant 0 : index
    %c0_149 = arith.constant 0 : index
    %391 = vector.load %arg23[%c0_148, %c0_149] : memref<2x3xf32, #tpu.memory_space<vmem>>, vector<2x3xf32>
    %392 = arith.mulf %391, %390 : vector<2x3xf32>
    %cst_150 = arith.constant dense<0.000000e+00> : vector<2xf32>
    %393 = vector.multi_reduction <add>, %392, %cst_150 [1] : vector<2x3xf32> to vector<2xf32>
    %394 = vector.shape_cast %393 : vector<2xf32> to vector<2x1xf32>
    %c0_151 = arith.constant 0 : index
    %c0_152 = arith.constant 0 : index
    %395 = vector.load %arg22[%c0_151, %c0_152] : memref<1x3xf32, #tpu.memory_space<vmem>>, vector<1x3xf32>
    %396 = vector.broadcast %395 : vector<1x3xf32> to vector<2x3xf32>
    %397 = arith.mulf %391, %396 : vector<2x3xf32>
    %cst_153 = arith.constant dense<0.000000e+00> : vector<2xf32>
    %398 = vector.multi_reduction <add>, %397, %cst_153 [1] : vector<2x3xf32> to vector<2xf32>
    %399 = vector.shape_cast %398 : vector<2xf32> to vector<2x1xf32>
    %400 = arith.mulf %399, %394 : vector<2x1xf32>
    %cst_154 = arith.constant dense<0.000000e+00> : vector<1xf32>
    %401 = vector.multi_reduction <add>, %400, %cst_154 [0] : vector<2x1xf32> to vector<1xf32>
    %402 = vector.shape_cast %401 : vector<1xf32> to vector<1x1xf32>
    %cst_155 = arith.constant dense<0.000000e+00> : vector<1xf32>
    %403 = vector.multi_reduction <add>, %399, %cst_155 [0] : vector<2x1xf32> to vector<1xf32>
    %404 = vector.shape_cast %403 : vector<1xf32> to vector<1x1xf32>
    %405 = arith.divf %402, %404 : vector<1x1xf32>
    %cst_156 = arith.constant 0.000000e+00 : f32
    %406 = vector.broadcast %cst_156 : f32 to vector<1x1xf32>
    %407 = arith.subf %406, %405 : vector<1x1xf32>
    %408 = tpu.iota {dimensions = array<i32: 1>} : vector<2x128xi32>
    %c3_i32 = arith.constant 3 : i32
    %409 = vector.broadcast %c3_i32 : i32 to vector<2x128xi32>
    %410 = arith.cmpi eq, %408, %409 : vector<2x128xi32>
    %411 = vector.shape_cast %407 : vector<1x1xf32> to vector<1x1xf32>
    %412 = vector.broadcast %411 : vector<1x1xf32> to vector<2x128xf32>
    %413 = arith.select %410, %412, %378 : vector<2x128xi1>, vector<2x128xf32>
    %c0_157 = arith.constant 0 : index
    %c0_158 = arith.constant 0 : index
    %414 = vector.load %arg24[%c0_157, %c0_158] : memref<2x128xf32, #tpu.memory_space<vmem>>, vector<2x128xf32>
    tpu.vector_store %arg24[%c0_157, %c0_158], %413 {strides = array<i32>} : memref<2x128xf32, #tpu.memory_space<vmem>>, vector<2x128xf32>,
    return
  }
}

</mosaic_0001>

<llo_original>
// kernel: tpu_custom_call.1
$region0: #{tpu_custom_call.1}
  #allocation0 [shape = 'u32[]', space=smem, size = 0x4, offset = 0x4, fixed_abs, tag = 'smem constant byte address 0x4 - core index']
  #allocation1 [shape = 'u32[72,128]{1,0:T(1,128)}', space=vmem, size = 0x9000, scoped, tag = 'internal scratch']
  %s0 = inlined_call_operand.vmem [shape: s32[16,1], index: 0, kind: input, shape index: {}]
  %s1 = inlined_call_operand.vmem [shape: f32[16,16], index: 1, kind: input, shape index: {}]
  %s2 = inlined_call_operand.hbm [shape: f32[16,32], index: 2, kind: input, shape index: {}]
  %s3 = inlined_call_operand.vmem [shape: bf16[64,32], index: 3, kind: input, shape index: {}]
  %s4 = inlined_call_operand.hbm [shape: f32[1,32], index: 4, kind: input, shape index: {}]
  %s5 = inlined_call_operand.hbm [shape: f32[1,32], index: 5, kind: input, shape index: {}]
  %s6 = inlined_call_operand.vmem [shape: bf16[2,32,96], index: 6, kind: input, shape index: {}]
  %s7 = inlined_call_operand.hbm [shape: f32[2,1,96], index: 7, kind: input, shape index: {}]
  %s8 = inlined_call_operand.vmem [shape: bf16[2,32,32], index: 8, kind: input, shape index: {}]
  %s9 = inlined_call_operand.hbm [shape: f32[2,1,32], index: 9, kind: input, shape index: {}]
  %s10 = inlined_call_operand.hbm [shape: f32[2,1,32], index: 10, kind: input, shape index: {}]
  %s11 = inlined_call_operand.hbm [shape: f32[2,1,32], index: 11, kind: input, shape index: {}]
  %s12 = inlined_call_operand.vmem [shape: bf16[2,32,64], index: 12, kind: input, shape index: {}]
  %s13 = inlined_call_operand.hbm [shape: f32[2,1,64], index: 13, kind: input, shape index: {}]
  %s14 = inlined_call_operand.vmem [shape: bf16[2,64,32], index: 14, kind: input, shape index: {}]
  %s15 = inlined_call_operand.hbm [shape: f32[2,1,32], index: 15, kind: input, shape index: {}]
  %s16 = inlined_call_operand.hbm [shape: f32[2,1,32], index: 16, kind: input, shape index: {}]
  %s17 = inlined_call_operand.hbm [shape: f32[2,1,32], index: 17, kind: input, shape index: {}]
  %s18 = inlined_call_operand.vmem [shape: bf16[32,32], index: 18, kind: input, shape index: {}]
  %s19 = inlined_call_operand.hbm [shape: f32[1,32], index: 19, kind: input, shape index: {}]
  %s20 = inlined_call_operand.hbm [shape: bf16[32,128], index: 20, kind: input, shape index: {}]
  %s21 = inlined_call_operand.vmem [shape: f32[1,128], index: 21, kind: input, shape index: {}]
  %s22 = inlined_call_operand.vmem [shape: f32[1,3], index: 22, kind: input, shape index: {}]
  %s23 = inlined_call_operand.vmem [shape: f32[2,3], index: 23, kind: input, shape index: {}]
  %s24 = inlined_call_operand.hbm [shape: f32[2,128], index: 24, kind: output, shape index: {}]
  %s25 = sld [smem:[#allocation0]]
  $region158: #{tpu_custom_call.1} parent=0
    _
  %s27 = ssub.s32 1, %s25
  %s28 = scalar_select 0, %s27, %s25
  $region1: #{tpu_custom_call.1} parent=0
    #allocation2 [shape = 'u8[8192]{0}', space=vmem, size = 0x2000, scoped, tag = 'input window, operand 2, single buffered']
    #allocation3 [shape = 's32[1]{0}', space=sflag, size = 0x4, scoped, tag = 'scoped memory for tpu_custom_call.1']
    #allocation4 [shape = 's32[1]{0}', space=sflag, size = 0x4, scoped, tag = 'scoped memory for tpu_custom_call.1']
    #allocation5 [shape = 'u8[512]{0}', space=vmem, size = 0x400, scoped, tag = 'input window, operand 4, single buffered']
    #allocation6 [shape = 's32[1]{0}', space=sflag, size = 0x4, scoped, tag = 'scoped memory for tpu_custom_call.1']
    #allocation7 [shape = 'u8[512]{0}', space=vmem, size = 0x400, scoped, tag = 'input window, operand 5, single buffered']
    #allocation8 [shape = 'u8[1024]{0}', space=vmem, size = 0x400, scoped, tag = 'input window, operand 7, single buffered']
    #allocation9 [shape = 's32[1]{0}', space=sflag, size = 0x4, scoped, tag = 'scoped memory for tpu_custom_call.1']
    #allocation10 [shape = 'u8[1024]{0}', space=vmem, size = 0x400, scoped, tag = 'input window, operand 9, single buffered']
    #allocation11 [shape = 'u8[1024]{0}', space=vmem, size = 0x400, scoped, tag = 'input window, operand 10, single buffered']
    #allocation12 [shape = 's32[1]{0}', space=sflag, size = 0x4, scoped, tag = 'scoped memory for tpu_custom_call.1']
    #allocation13 [shape = 'u8[1024]{0}', space=vmem, size = 0x400, scoped, tag = 'input window, operand 11, single buffered']
    #allocation14 [shape = 'u8[1024]{0}', space=vmem, size = 0x400, scoped, tag = 'input window, operand 13, single buffered']
    #allocation15 [shape = 's32[1]{0}', space=sflag, size = 0x4, scoped, tag = 'scoped memory for tpu_custom_call.1']
    #allocation16 [shape = 'u8[1024]{0}', space=vmem, size = 0x400, scoped, tag = 'input window, operand 15, single buffered']
    #allocation17 [shape = 'u8[1024]{0}', space=vmem, size = 0x400, scoped, tag = 'input window, operand 16, single buffered']
    #allocation18 [shape = 's32[1]{0}', space=sflag, size = 0x4, scoped, tag = 'scoped memory for tpu_custom_call.1']
    #allocation19 [shape = 'u8[1024]{0}', space=vmem, size = 0x400, scoped, tag = 'input window, operand 17, single buffered']
    #allocation20 [shape = 'u8[512]{0}', space=vmem, size = 0x400, scoped, tag = 'input window, operand 19, single buffered']
    #allocation21 [shape = 's32[1]{0}', space=sflag, size = 0x4, scoped, tag = 'scoped memory for tpu_custom_call.1']
    #allocation22 [shape = 'u8[8192]{0}', space=vmem, size = 0x2000, scoped, tag = 'input window, operand 20, single buffered']
    #allocation23 [shape = 'u8[1024]{0}', space=vmem, size = 0x400, scoped, tag = 'output window, operand 0, single buffered']
    %29 = vsyncpa [#allocation3], 0
    %30 = vsyncpa [#allocation6], 0
    %31 = vsyncpa [#allocation9], 0
    %32 = vsyncpa [#allocation12], 0
    %33 = vsyncpa [#allocation15], 0
    %34 = vsyncpa [#allocation18], 0
    %35 = vsyncpa [#allocation21], 0
    %36 = vsyncpa [#allocation4], 0
    // Predicated region
    $region2: #{tpu_custom_call.1} parent=1 // pred_check
      _
    $region3: #{tpu_custom_call.1} parent=1 // pred_check_branch
      %38 = sbr.rel (0) target = $region5
    $region4: #{tpu_custom_call.1} parent=1 // pred_region
      _
    $region5: #{tpu_custom_call.1} parent=1 // pred_fallthru
      _
    // Predicated region
    $region6: #{tpu_custom_call.1} parent=1 // pred_check
      _
    $region7: #{tpu_custom_call.1} parent=1 // pred_check_branch
      %40 = sbr.rel (0) target = $region9
    $region8: #{tpu_custom_call.1} parent=1 // pred_region
      _
    $region9: #{tpu_custom_call.1} parent=1 // pred_fallthru
      _
    // Predicated region
    $region10: #{tpu_custom_call.1} parent=1 // pred_check
      _
    $region11: #{tpu_custom_call.1} parent=1 // pred_check_branch
      %42 = sbr.rel (0) target = $region13
    $region12: #{tpu_custom_call.1} parent=1 // pred_region
      %44 = vsyncadd [#allocation3], 0
      %s45 = sshll.u32 %s2, 4
      %s46 = int_to_ptr.hbm [resolvable:$true] %s45
      %s47 = sshll.u32 [#allocation2], 4
      %s48 = int_to_ptr.vmem [resolvable:$true] %s47
      %53 = dma.hbm_to_vmem [thread:$0]  %s46, 256, %s48, [#allocation3], 128, 128, 8
    $region13: #{tpu_custom_call.1} parent=1 // pred_fallthru
      _
    // Predicated region
    $region14: #{tpu_custom_call.1} parent=1 // pred_check
      _
    $region15: #{tpu_custom_call.1} parent=1 // pred_check_branch
      %55 = sbr.rel (0) target = $region17
    $region16: #{tpu_custom_call.1} parent=1 // pred_region
      _
    $region17: #{tpu_custom_call.1} parent=1 // pred_fallthru
      _
    // Predicated region
    $region18: #{tpu_custom_call.1} parent=1 // pred_check
      _
    $region19: #{tpu_custom_call.1} parent=1 // pred_check_branch
      %57 = sbr.rel (0) target = $region21
    $region20: #{tpu_custom_call.1} parent=1 // pred_region
      %59 = vsyncadd [#allocation6], 0
      %s61 = sshll.u32 %s4, 4
      %s62 = int_to_ptr.hbm [resolvable:$true] %s61
      %s63 = sshll.u32 [#allocation5], 4
      %s64 = int_to_ptr.vmem [resolvable:$true] %s63
      %66 = dma.hbm_to_vmem [thread:$0]  %s62, 16, %s64, [#allocation6]
    $region21: #{tpu_custom_call.1} parent=1 // pred_fallthru
      _
    // Predicated region
    $region22: #{tpu_custom_call.1} parent=1 // pred_check
      _
    $region23: #{tpu_custom_call.1} parent=1 // pred_check_branch
      %68 = sbr.rel (0) target = $region25
    $region24: #{tpu_custom_call.1} parent=1 // pred_region
      %70 = vsyncadd [#allocation6], 0
      %s72 = sshll.u32 %s5, 4
      %s73 = int_to_ptr.hbm [resolvable:$true] %s72
      %s74 = sshll.u32 [#allocation7], 4
      %s75 = int_to_ptr.vmem [resolvable:$true] %s74
      %77 = dma.hbm_to_vmem [thread:$0]  %s73, 16, %s75, [#allocation6]
    $region25: #{tpu_custom_call.1} parent=1 // pred_fallthru
      _
    // Predicated region
    $region26: #{tpu_custom_call.1} parent=1 // pred_check
      _
    $region27: #{tpu_custom_call.1} parent=1 // pred_check_branch
      %79 = sbr.rel (0) target = $region29
    $region28: #{tpu_custom_call.1} parent=1 // pred_region
      _
    $region29: #{tpu_custom_call.1} parent=1 // pred_fallthru
      _
    // Predicated region
    $region30: #{tpu_custom_call.1} parent=1 // pred_check
      _
    $region31: #{tpu_custom_call.1} parent=1 // pred_check_branch
      %81 = sbr.rel (0) target = $region33
    $region32: #{tpu_custom_call.1} parent=1 // pred_region
      %83 = vsyncadd [#allocation9], 0
      %s84 = sshll.u32 %s7, 4
      %s85 = int_to_ptr.hbm [resolvable:$true] %s84
      %s86 = sshll.u32 [#allocation8], 4
      %s87 = int_to_ptr.vmem [resolvable:$true] %s86
      %92 = dma.hbm_to_vmem [thread:$0]  %s85, 32, %s87, [#allocation9], 16, 16, 1
    $region33: #{tpu_custom_call.1} parent=1 // pred_fallthru
      _
    // Predicated region
    $region34: #{tpu_custom_call.1} parent=1 // pred_check
      _
    $region35: #{tpu_custom_call.1} parent=1 // pred_check_branch
      %94 = sbr.rel (0) target = $region37
    $region36: #{tpu_custom_call.1} parent=1 // pred_region
      _
    $region37: #{tpu_custom_call.1} parent=1 // pred_fallthru
      _
    // Predicated region
    $region38: #{tpu_custom_call.1} parent=1 // pred_check
      _
    $region39: #{tpu_custom_call.1} parent=1 // pred_check_branch
      %96 = sbr.rel (0) target = $region41
    $region40: #{tpu_custom_call.1} parent=1 // pred_region
      %98 = vsyncadd [#allocation9], 0
      %s99 = sshll.u32 %s9, 4
      %s100 = int_to_ptr.hbm [resolvable:$true] %s99
      %s101 = sshll.u32 [#allocation10], 4
      %s102 = int_to_ptr.vmem [resolvable:$true] %s101
      %107 = dma.hbm_to_vmem [thread:$0]  %s100, 32, %s102, [#allocation9], 16, 16, 1
    $region41: #{tpu_custom_call.1} parent=1 // pred_fallthru
      _
    // Predicated region
    $region42: #{tpu_custom_call.1} parent=1 // pred_check
      _
    $region43: #{tpu_custom_call.1} parent=1 // pred_check_branch
      %109 = sbr.rel (0) target = $region45
    $region44: #{tpu_custom_call.1} parent=1 // pred_region
      %111 = vsyncadd [#allocation12], 0
      %s112 = sshll.u32 %s10, 4
      %s113 = int_to_ptr.hbm [resolvable:$true] %s112
      %s114 = sshll.u32 [#allocation11], 4
      %s115 = int_to_ptr.vmem [resolvable:$true] %s114
      %120 = dma.hbm_to_vmem [thread:$0]  %s113, 32, %s115, [#allocation12], 16, 16, 1
    $region45: #{tpu_custom_call.1} parent=1 // pred_fallthru
      _
    // Predicated region
    $region46: #{tpu_custom_call.1} parent=1 // pred_check
      _
    $region47: #{tpu_custom_call.1} parent=1 // pred_check_branch
      %122 = sbr.rel (0) target = $region49
    $region48: #{tpu_custom_call.1} parent=1 // pred_region
      %124 = vsyncadd [#allocation12], 0
      %s125 = sshll.u32 %s11, 4
      %s126 = int_to_ptr.hbm [resolvable:$true] %s125
      %s127 = sshll.u32 [#allocation13], 4
      %s128 = int_to_ptr.vmem [resolvable:$true] %s127
      %133 = dma.hbm_to_vmem [thread:$0]  %s126, 32, %s128, [#allocation12], 16, 16, 1
    $region49: #{tpu_custom_call.1} parent=1 // pred_fallthru
      _
    // Predicated region
    $region50: #{tpu_custom_call.1} parent=1 // pred_check
      _
    $region51: #{tpu_custom_call.1} parent=1 // pred_check_branch
      %135 = sbr.rel (0) target = $region53
    $region52: #{tpu_custom_call.1} parent=1 // pred_region
      _
    $region53: #{tpu_custom_call.1} parent=1 // pred_fallthru
      _
    // Predicated region
    $region54: #{tpu_custom_call.1} parent=1 // pred_check
      _
    $region55: #{tpu_custom_call.1} parent=1 // pred_check_branch
      %137 = sbr.rel (0) target = $region57
    $region56: #{tpu_custom_call.1} parent=1 // pred_region
      %139 = vsyncadd [#allocation15], 0
      %s140 = sshll.u32 %s13, 4
      %s141 = int_to_ptr.hbm [resolvable:$true] %s140
      %s142 = sshll.u32 [#allocation14], 4
      %s143 = int_to_ptr.vmem [resolvable:$true] %s142
      %148 = dma.hbm_to_vmem [thread:$0]  %s141, 32, %s143, [#allocation15], 16, 16, 1
    $region57: #{tpu_custom_call.1} parent=1 // pred_fallthru
      _
    // Predicated region
    $region58: #{tpu_custom_call.1} parent=1 // pred_check
      _
    $region59: #{tpu_custom_call.1} parent=1 // pred_check_branch
      %150 = sbr.rel (0) target = $region61
    $region60: #{tpu_custom_call.1} parent=1 // pred_region
      _
    $region61: #{tpu_custom_call.1} parent=1 // pred_fallthru
      _
    // Predicated region
    $region62: #{tpu_custom_call.1} parent=1 // pred_check
      _
    $region63: #{tpu_custom_call.1} parent=1 // pred_check_branch
      %152 = sbr.rel (0) target = $region65
    $region64: #{tpu_custom_call.1} parent=1 // pred_region
      %154 = vsyncadd [#allocation15], 0
      %s155 = sshll.u32 %s15, 4
      %s156 = int_to_ptr.hbm [resolvable:$true] %s155
      %s157 = sshll.u32 [#allocation16], 4
      %s158 = int_to_ptr.vmem [resolvable:$true] %s157
      %163 = dma.hbm_to_vmem [thread:$0]  %s156, 32, %s158, [#allocation15], 16, 16, 1
    $region65: #{tpu_custom_call.1} parent=1 // pred_fallthru
      _
    // Predicated region
    $region66: #{tpu_custom_call.1} parent=1 // pred_check
      _
    $region67: #{tpu_custom_call.1} parent=1 // pred_check_branch
      %165 = sbr.rel (0) target = $region69
    $region68: #{tpu_custom_call.1} parent=1 // pred_region
      %167 = vsyncadd [#allocation18], 0
      %s168 = sshll.u32 %s16, 4
      %s169 = int_to_ptr.hbm [resolvable:$true] %s168
      %s170 = sshll.u32 [#allocation17], 4
      %s171 = int_to_ptr.vmem [resolvable:$true] %s170
      %176 = dma.hbm_to_vmem [thread:$0]  %s169, 32, %s171, [#allocation18], 16, 16, 1
    $region69: #{tpu_custom_call.1} parent=1 // pred_fallthru
      _
    // Predicated region
    $region70: #{tpu_custom_call.1} parent=1 // pred_check
      _
    $region71: #{tpu_custom_call.1} parent=1 // pred_check_branch
      %178 = sbr.rel (0) target = $region73
    $region72: #{tpu_custom_call.1} parent=1 // pred_region
      %180 = vsyncadd [#allocation18], 0
      %s181 = sshll.u32 %s17, 4
      %s182 = int_to_ptr.hbm [resolvable:$true] %s181
      %s183 = sshll.u32 [#allocation19], 4
      %s184 = int_to_ptr.vmem [resolvable:$true] %s183
      %189 = dma.hbm_to_vmem [thread:$0]  %s182, 32, %s184, [#allocation18], 16, 16, 1
    $region73: #{tpu_custom_call.1} parent=1 // pred_fallthru
      _
    // Predicated region
    $region74: #{tpu_custom_call.1} parent=1 // pred_check
      _
    $region75: #{tpu_custom_call.1} parent=1 // pred_check_branch
      %191 = sbr.rel (0) target = $region77
    $region76: #{tpu_custom_call.1} parent=1 // pred_region
      _
    $region77: #{tpu_custom_call.1} parent=1 // pred_fallthru
      _
    // Predicated region
    $region78: #{tpu_custom_call.1} parent=1 // pred_check
      _
    $region79: #{tpu_custom_call.1} parent=1 // pred_check_branch
      %193 = sbr.rel (0) target = $region81
    $region80: #{tpu_custom_call.1} parent=1 // pred_region
      %195 = vsyncadd [#allocation21], 0
      %s197 = sshll.u32 %s19, 4
      %s198 = int_to_ptr.hbm [resolvable:$true] %s197
      %s199 = sshll.u32 [#allocation20], 4
      %s200 = int_to_ptr.vmem [resolvable:$true] %s199
      %202 = dma.hbm_to_vmem [thread:$0]  %s198, 16, %s200, [#allocation21]
    $region81: #{tpu_custom_call.1} parent=1 // pred_fallthru
      _
    // Predicated region
    $region82: #{tpu_custom_call.1} parent=1 // pred_check
      _
    $region83: #{tpu_custom_call.1} parent=1 // pred_check_branch
      %204 = sbr.rel (0) target = $region85
    $region84: #{tpu_custom_call.1} parent=1 // pred_region
      %206 = vsyncadd [#allocation21], 0
      %s207 = sshll.u32 %s20, 4
      %s208 = int_to_ptr.hbm [resolvable:$true] %s207
      %s209 = sshll.u32 [#allocation22], 4
      %s210 = int_to_ptr.vmem [resolvable:$true] %s209
      %215 = dma.hbm_to_vmem [thread:$0]  %s208, 256, %s210, [#allocation21], 64, 64, 4
    $region85: #{tpu_custom_call.1} parent=1 // pred_fallthru
      _
    // Predicated region
    $region86: #{tpu_custom_call.1} parent=1 // pred_check
      _
    $region87: #{tpu_custom_call.1} parent=1 // pred_check_branch
      %217 = sbr.rel (0) target = $region89
    $region88: #{tpu_custom_call.1} parent=1 // pred_region
      _
    $region89: #{tpu_custom_call.1} parent=1 // pred_fallthru
      _
    // Predicated region
    $region90: #{tpu_custom_call.1} parent=1 // pred_check
      _
    $region91: #{tpu_custom_call.1} parent=1 // pred_check_branch
      %219 = sbr.rel (0) target = $region93
    $region92: #{tpu_custom_call.1} parent=1 // pred_region
      _
    $region93: #{tpu_custom_call.1} parent=1 // pred_fallthru
      _
    // Predicated region
    $region94: #{tpu_custom_call.1} parent=1 // pred_check
      _
    $region95: #{tpu_custom_call.1} parent=1 // pred_check_branch
      %221 = sbr.rel (0) target = $region97
    $region96: #{tpu_custom_call.1} parent=1 // pred_region
      _
    $region97: #{tpu_custom_call.1} parent=1 // pred_fallthru
      _
    // Predicated region
    $region98: #{tpu_custom_call.1} parent=1 // pred_check
      _
    $region99: #{tpu_custom_call.1} parent=1 // pred_check_branch
      %223 = sbr.rel (0) target = $region101
    $region100: #{tpu_custom_call.1} parent=1 // pred_region
      %225 = dma.done [#allocation3], 256
    $region101: #{tpu_custom_call.1} parent=1 // pred_fallthru
      _
    // Predicated region
    $region102: #{tpu_custom_call.1} parent=1 // pred_check
      _
    $region103: #{tpu_custom_call.1} parent=1 // pred_check_branch
      %227 = sbr.rel (0) target = $region105
    $region104: #{tpu_custom_call.1} parent=1 // pred_region
      %229 = dma.done [#allocation6], 16
    $region105: #{tpu_custom_call.1} parent=1 // pred_fallthru
      _
    // Predicated region
    $region106: #{tpu_custom_call.1} parent=1 // pred_check
      _
    $region107: #{tpu_custom_call.1} parent=1 // pred_check_branch
      %231 = sbr.rel (0) target = $region109
    $region108: #{tpu_custom_call.1} parent=1 // pred_region
      %233 = dma.done [#allocation6], 16
    $region109: #{tpu_custom_call.1} parent=1 // pred_fallthru
      _
    // Predicated region
    $region110: #{tpu_custom_call.1} parent=1 // pred_check
      _
    $region111: #{tpu_custom_call.1} parent=1 // pred_check_branch
      %235 = sbr.rel (0) target = $region113
    $region112: #{tpu_custom_call.1} parent=1 // pred_region
      %237 = dma.done [#allocation9], 32
    $region113: #{tpu_custom_call.1} parent=1 // pred_fallthru
      _
    // Predicated region
    $region114: #{tpu_custom_call.1} parent=1 // pred_check
      _
    $region115: #{tpu_custom_call.1} parent=1 // pred_check_branch
      %239 = sbr.rel (0) target = $region117
    $region116: #{tpu_custom_call.1} parent=1 // pred_region
      %241 = dma.done [#allocation9], 32
    $region117: #{tpu_custom_call.1} parent=1 // pred_fallthru
      _
    // Predicated region
    $region118: #{tpu_custom_call.1} parent=1 // pred_check
      _
    $region119: #{tpu_custom_call.1} parent=1 // pred_check_branch
      %243 = sbr.rel (0) target = $region121
    $region120: #{tpu_custom_call.1} parent=1 // pred_region
      %245 = dma.done [#allocation12], 32
    $region121: #{tpu_custom_call.1} parent=1 // pred_fallthru
      _
    // Predicated region
    $region122: #{tpu_custom_call.1} parent=1 // pred_check
      _
    $region123: #{tpu_custom_call.1} parent=1 // pred_check_branch
      %247 = sbr.rel (0) target = $region125
    $region124: #{tpu_custom_call.1} parent=1 // pred_region
      %249 = dma.done [#allocation12], 32
    $region125: #{tpu_custom_call.1} parent=1 // pred_fallthru
      _
    // Predicated region
    $region126: #{tpu_custom_call.1} parent=1 // pred_check
      _
    $region127: #{tpu_custom_call.1} parent=1 // pred_check_branch
      %251 = sbr.rel (0) target = $region129
    $region128: #{tpu_custom_call.1} parent=1 // pred_region
      %253 = dma.done [#allocation15], 32
    $region129: #{tpu_custom_call.1} parent=1 // pred_fallthru
      _
    // Predicated region
    $region130: #{tpu_custom_call.1} parent=1 // pred_check
      _
    $region131: #{tpu_custom_call.1} parent=1 // pred_check_branch
      %255 = sbr.rel (0) target = $region133
    $region132: #{tpu_custom_call.1} parent=1 // pred_region
      %257 = dma.done [#allocation15], 32
    $region133: #{tpu_custom_call.1} parent=1 // pred_fallthru
      _
    // Predicated region
    $region134: #{tpu_custom_call.1} parent=1 // pred_check
      _
    $region135: #{tpu_custom_call.1} parent=1 // pred_check_branch
      %259 = sbr.rel (0) target = $region137
    $region136: #{tpu_custom_call.1} parent=1 // pred_region
      %261 = dma.done [#allocation18], 32
    $region137: #{tpu_custom_call.1} parent=1 // pred_fallthru
      _
    // Predicated region
    $region138: #{tpu_custom_call.1} parent=1 // pred_check
      _
    $region139: #{tpu_custom_call.1} parent=1 // pred_check_branch
      %263 = sbr.rel (0) target = $region141
    $region140: #{tpu_custom_call.1} parent=1 // pred_region
      %265 = dma.done [#allocation18], 32
    $region141: #{tpu_custom_call.1} parent=1 // pred_fallthru
      _
    // Predicated region
    $region142: #{tpu_custom_call.1} parent=1 // pred_check
      _
    $region143: #{tpu_custom_call.1} parent=1 // pred_check_branch
      %267 = sbr.rel (0) target = $region145
    $region144: #{tpu_custom_call.1} parent=1 // pred_region
      %269 = dma.done [#allocation21], 16
    $region145: #{tpu_custom_call.1} parent=1 // pred_fallthru
      _
    // Predicated region
    $region146: #{tpu_custom_call.1} parent=1 // pred_check
      _
    $region147: #{tpu_custom_call.1} parent=1 // pred_check_branch
      %271 = sbr.rel (0) target = $region149
    $region148: #{tpu_custom_call.1} parent=1 // pred_region
      %273 = dma.done [#allocation21], 256
    $region149: #{tpu_custom_call.1} parent=1 // pred_fallthru
      _
    %v275 = vld [vmem:[%s0] sm:$0xff]
    %v276 = vld [vmem:[%s0 + $0x8] sm:$0xff]
    %v277 = vlaneseq
    %v278 = vand.u32 %v277, 127
    %279 = vset.pattern.permute.xlu0 0
    %280 = vperm.xlu0 %279, %v275
    %v281 = vpop.permute.xlu0 %280
    %282 = vset.pattern.permute.xlu0 0
    %283 = vperm.xlu0 %282, %v276
    %v284 = vpop.permute.xlu0 %283
    %vm285 = vcmp.eq.s32.totalorder %v278, %v281
    %vm286 = vcmp.eq.s32.totalorder %v278, %v284
    %v287 = vsel %vm285, 1, 0
    %v288 = vsel %vm286, 1, 0
    %v289 = vcvt.s32.f32 %v287
    %v290 = vcvt.s32.f32 %v288
    %v291 = vpack.c.bf16 %v290, %v289
    %v292 = vld [vmem:[%s3] sm:$0xf]
    %v293 = vld [vmem:[%s3 + $0x4] sm:$0xf]
    %v294 = vld [vmem:[%s3 + $0x8] sm:$0xf]
    %v295 = vld [vmem:[%s3 + $0xc] sm:$0xf]
    %v296 = vld [vmem:[%s3 + $0x10] sm:$0xf]
    %v297 = vld [vmem:[%s3 + $0x14] sm:$0xf]
    %v298 = vld [vmem:[%s3 + $0x18] sm:$0xf]
    %v299 = vld [vmem:[%s3 + $0x1c] sm:$0xf]
    %v300 = vld [vmem:[#allocation2] sm:$0xff]
    %v301 = vld [vmem:[#allocation2 + $0x8] sm:$0xff]
    %v310 = vunpack.c.l.b16 %v292
    %v311 = vunpack.c.l.b16 %v293
    %v312 = vunpack.c.l.b16 %v294
    %v313 = vunpack.c.l.b16 %v295
    %v314 = vunpack.c.l.b16 %v296
    %v315 = vunpack.c.l.b16 %v297
    %v316 = vunpack.c.l.b16 %v298
    %v317 = vunpack.c.l.b16 %v299
    %v318 = vpack.c.b16 %v311, %v310
    %v319 = vpack.c.b16 %v313, %v312
    %v320 = vpack.c.b16 %v315, %v314
    %v321 = vpack.c.b16 %v317, %v316
    %vm326 = vcmask 523264
    %v328 = vsel %vm326, %v291, 0
    %330 = vmatpush.bf16.msra.mxu0 0
    %331 = vmatpush.bf16.msra.mxu0 0
    %332 = vmatpush.bf16.msra.mxu0 0
    %333 = vmatpush.bf16.msra.mxu0 0
    %334 = vmatpush.bf16.msra.mxu0 %v321
    %335 = vmatpush.bf16.msra.mxu0 %v320
    %336 = vmatpush.bf16.msra.mxu0 %v319
    %337 = vmatpush.bf16.msra.mxu0 %v318
    %338 = vmatmul.bf16.gmra.mxu0 %v328
    %v339 = vpop.f32.mrf.mxu0
    %v340 = vadd.f32 %v300, %v339
    %v341 = vpop.f32.mrf.mxu0
    %v342 = vadd.f32 %v301, %v341
    %343 = vdwg.mxu0
    %v344 = vld [vmem:[#allocation5] sm:$0x1]
    %v345 = vld [vmem:[#allocation7] sm:$0x1]
    %vm346 = vcmask 261120
    %v347 = vsel %vm346, %v340, 0.0
    %348 = vadd.xlane.f32.xlu0 %v347
    %v349 = vpop.xlane.xlu0 %348
    %v350 = vsel %vm346, %v342, 0.0
    %351 = vadd.xlane.f32.xlu0 %v350
    %v352 = vpop.xlane.xlu0 %351
    %v353 = vrcp.pop 32.0
    %v354 = vmul.f32 32.0, %v353
    %v355 = vsub.f32 1.0, %v354
    %v356 = vmul.f32 %v353, %v355
    %v357 = vadd.f32 %v353, %v356
    %vm358 = vweird.f32 %v353
    %v359 = vsel %vm358, %v353, %v357
    %v360 = vmul.f32 %v349, %v359
    %v361 = vmul.f32 %v352, %v359
    %v362 = vsub.f32 %v340, %v360
    %v363 = vsub.f32 %v342, %v361
    %v364 = vmul.f32 %v362, %v362
    %v365 = vmul.f32 %v363, %v363
    %v366 = vsel %vm346, %v364, 0.0
    %367 = vadd.xlane.f32.xlu0 %v366
    %v368 = vpop.xlane.xlu0 %367
    %v369 = vsel %vm346, %v365, 0.0
    %370 = vadd.xlane.f32.xlu0 %v369
    %v371 = vpop.xlane.xlu0 %370
    %v372 = vmul.f32 %v368, %v359
    %v373 = vmul.f32 %v371, %v359
    %v374 = vadd.f32 %v372, 1e-07
    %v375 = vadd.f32 %v373, 1e-07
    %v376 = vrsqrt.pop %v374
    %v377 = vmul.f32 %v376, %v374
    %v378 = vmul.f32 %v377, %v376
    %v379 = vmul.f32 0.5, %v378
    %v380 = vsub.f32 1.5, %v379
    %v381 = vmul.f32 %v376, %v380
    %vm382 = vweird.f32 %v374
    %vm383 = vweird.f32 %v376
    %vm384 = vmor %vm382, %vm383
    %v385 = vsel %vm384, %v376, %v381
    %v386 = vrsqrt.pop %v375
    %v387 = vmul.f32 %v386, %v375
    %v388 = vmul.f32 %v387, %v386
    %v389 = vmul.f32 0.5, %v388
    %v390 = vsub.f32 1.5, %v389
    %v391 = vmul.f32 %v386, %v390
    %vm392 = vweird.f32 %v375
    %vm393 = vweird.f32 %v386
    %vm394 = vmor %vm392, %vm393
    %v395 = vsel %vm394, %v386, %v391
    %v396 = vmul.f32 %v362, %v385
    %v397 = vmul.f32 %v363, %v395
    %v399 = vperm.slane %v344, 0
    %v401 = vmul.f32 %v396, %v399
    %v402 = vmul.f32 %v397, %v399
    %v404 = vperm.slane %v345, 0
    %v406 = vadd.f32 %v401, %v404
    %v407 = vadd.f32 %v402, %v404
    %v408 = vld [vmem:[%s1] sm:$0xff]
    %v409 = vld [vmem:[%s1 + $0x8] sm:$0xff]
    %v410 = vpack.c.bf16 %v407, %v406
    %v411 = vld [vmem:[%s6] sm:$0xf]
    %v412 = vld [vmem:[%s6 + $0x4] sm:$0xf]
    %v413 = vld [vmem:[%s6 + $0x8] sm:$0xf]
    %v414 = vld [vmem:[%s6 + $0xc] sm:$0xf]
    %v415 = vld [vmem:[#allocation8] sm:$0x1]
    %v417 = vperm.slane %v415, 0
    %v423 = vunpack.c.l.b16 %v411
    %v424 = vunpack.c.l.b16 %v412
    %v425 = vunpack.c.l.b16 %v413
    %v426 = vunpack.c.l.b16 %v414
    %v427 = vpack.c.b16 %v424, %v423
    %v428 = vpack.c.b16 %v426, %v425
    %v432 = vsel %vm346, %v410, 0
    %434 = vmatpush.bf16.msra.mxu0 0
    %435 = vmatpush.bf16.msra.mxu0 0
    %436 = vmatpush.bf16.msra.mxu0 0
    %437 = vmatpush.bf16.msra.mxu0 0
    %438 = vmatpush.bf16.msra.mxu0 0
    %439 = vmatpush.bf16.msra.mxu0 0
    %440 = vmatpush.bf16.msra.mxu0 %v428
    %441 = vmatpush.bf16.msra.mxu0 %v427
    %442 = vmatmul.bf16.gmra.mxu0 %v432
    %v443 = vpop.f32.mrf.mxu0
    %v444 = vadd.f32 %v417, %v443
    %v445 = vpop.f32.mrf.mxu0
    %v446 = vadd.f32 %v417, %v445
    %447 = vdwg.mxu0
    %450 = vrot.lane.b32.xlu0 %v444, 120
    %v451 = vpop.permute.xlu0 %450
    %452 = vrot.lane.b32.xlu0 %v446, 120
    %v453 = vpop.permute.xlu0 %452
    %456 = vrot.lane.b32.xlu0 %v444, 112
    %v457 = vpop.permute.xlu0 %456
    %458 = vrot.lane.b32.xlu0 %v446, 112
    %v459 = vpop.permute.xlu0 %458
    %462 = vrot.lane.b32.xlu0 %v444, 104
    %v463 = vpop.permute.xlu0 %462
    %464 = vrot.lane.b32.xlu0 %v446, 104
    %v465 = vpop.permute.xlu0 %464
    %v468 = vpack.c.bf16 %v444, %v444
    %v469 = vpack.c.bf16 %v446, %v446
    %v470 = vpack.c.bf16 %v451, %v451
    %v471 = vpack.c.bf16 %v453, %v453
    %v472 = vpack.c.bf16 %v457, %v457
    %v473 = vpack.c.bf16 %v459, %v459
    %v474 = vpack.c.bf16 %v463, %v463
    %v475 = vpack.c.bf16 %v465, %v465
    %v478 = vunpack.c.l.b16 %v468
    %v479 = vunpack.c.l.b16 %v469
    %v480 = vpack.c.b16 %v479, %v478
    %481 = vrot.lane.b32.xlu0 %v480, 96
    %v482 = vpop.permute.xlu0 %481
    %vm483 = vcmask 64512
    %v485 = vsel %vm483, %v480, 0
    %v488 = vsel %vm483, %v482, 0
    %490 = vmatpush.bf16.xpose.msra.mxu0 0
    %491 = vmatpush.bf16.xpose.msra.mxu0 0
    %492 = vmatpush.bf16.xpose.msra.mxu0 0
    %493 = vmatpush.bf16.xpose.msra.mxu0 0
    %494 = vmatpush.bf16.xpose.msra.mxu0 0
    %495 = vmatpush.bf16.xpose.msra.mxu0 0
    %496 = vmatpush.bf16.xpose.msra.mxu0 0
    %497 = vmatpush.bf16.xpose.msra.mxu0 %v488
    %498 = vmatmul.bf16.gmra.mxu0 %v485
    %v499 = vpop.f32.mrf.mxu0
    %v500 = vadd.f32 %v408, %v499
    %v501 = vpop.f32.mrf.mxu0
    %v502 = vadd.f32 %v409, %v501
    %503 = vdwg.mxu0
    %v506 = vunpack.c.l.b16 %v470
    %v507 = vunpack.c.l.b16 %v471
    %v508 = vpack.c.b16 %v507, %v506
    %509 = vrot.lane.b32.xlu0 %v508, 96
    %v510 = vpop.permute.xlu0 %509
    %v512 = vsel %vm483, %v508, 0
    %v515 = vsel %vm483, %v510, 0
    %517 = vmatpush.bf16.xpose.msra.mxu0 0
    %518 = vmatpush.bf16.xpose.msra.mxu0 0
    %519 = vmatpush.bf16.xpose.msra.mxu0 0
    %520 = vmatpush.bf16.xpose.msra.mxu0 0
    %521 = vmatpush.bf16.xpose.msra.mxu0 0
    %522 = vmatpush.bf16.xpose.msra.mxu0 0
    %523 = vmatpush.bf16.xpose.msra.mxu0 0
    %524 = vmatpush.bf16.xpose.msra.mxu0 %v515
    %525 = vmatmul.bf16.gmra.mxu0 %v512
    %v526 = vpop.f32.mrf.mxu0
    %v527 = vadd.f32 %v408, %v526
    %v528 = vpop.f32.mrf.mxu0
    %v529 = vadd.f32 %v409, %v528
    %530 = vdwg.mxu0
    %v533 = vunpack.c.l.b16 %v472
    %v534 = vunpack.c.l.b16 %v473
    %v535 = vpack.c.b16 %v534, %v533
    %536 = vrot.lane.b32.xlu0 %v535, 96
    %v537 = vpop.permute.xlu0 %536
    %v539 = vsel %vm483, %v535, 0
    %v542 = vsel %vm483, %v537, 0
    %544 = vmatpush.bf16.xpose.msra.mxu0 0
    %545 = vmatpush.bf16.xpose.msra.mxu0 0
    %546 = vmatpush.bf16.xpose.msra.mxu0 0
    %547 = vmatpush.bf16.xpose.msra.mxu0 0
    %548 = vmatpush.bf16.xpose.msra.mxu0 0
    %549 = vmatpush.bf16.xpose.msra.mxu0 0
    %550 = vmatpush.bf16.xpose.msra.mxu0 0
    %551 = vmatpush.bf16.xpose.msra.mxu0 %v542
    %552 = vmatmul.bf16.gmra.mxu0 %v539
    %v553 = vpop.f32.mrf.mxu0
    %v554 = vadd.f32 %v408, %v553
    %v555 = vpop.f32.mrf.mxu0
    %v556 = vadd.f32 %v409, %v555
    %557 = vdwg.mxu0
    %v560 = vunpack.c.l.b16 %v474
    %v561 = vunpack.c.l.b16 %v475
    %v562 = vpack.c.b16 %v561, %v560
    %563 = vrot.lane.b32.xlu0 %v562, 96
    %v564 = vpop.permute.xlu0 %563
    %v566 = vsel %vm483, %v562, 0
    %v569 = vsel %vm483, %v564, 0
    %571 = vmatpush.bf16.xpose.msra.mxu0 0
    %572 = vmatpush.bf16.xpose.msra.mxu0 0
    %573 = vmatpush.bf16.xpose.msra.mxu0 0
    %574 = vmatpush.bf16.xpose.msra.mxu0 0
    %575 = vmatpush.bf16.xpose.msra.mxu0 0
    %576 = vmatpush.bf16.xpose.msra.mxu0 0
    %577 = vmatpush.bf16.xpose.msra.mxu0 0
    %578 = vmatpush.bf16.xpose.msra.mxu0 %v569
    %579 = vmatmul.bf16.gmra.mxu0 %v566
    %v580 = vpop.f32.mrf.mxu0
    %v581 = vadd.f32 %v408, %v580
    %v582 = vpop.f32.mrf.mxu0
    %v583 = vadd.f32 %v409, %v582
    %584 = vdwg.mxu0
    %vm585 = vcmask 130048
    %v586 = vsel %vm585, %v500, -inf
    %587 = vmax.xlane.f32.xlu0 %v586
    %v588 = vpop.xlane.xlu0 %587
    %v589 = vsel %vm585, %v502, -inf
    %590 = vmax.xlane.f32.xlu0 %v589
    %v591 = vpop.xlane.xlu0 %590
    %v592 = vsel %vm585, %v527, -inf
    %593 = vmax.xlane.f32.xlu0 %v592
    %v594 = vpop.xlane.xlu0 %593
    %v595 = vsel %vm585, %v529, -inf
    %596 = vmax.xlane.f32.xlu0 %v595
    %v597 = vpop.xlane.xlu0 %596
    %v598 = vsel %vm585, %v554, -inf
    %599 = vmax.xlane.f32.xlu0 %v598
    %v600 = vpop.xlane.xlu0 %599
    %v601 = vsel %vm585, %v556, -inf
    %602 = vmax.xlane.f32.xlu0 %v601
    %v603 = vpop.xlane.xlu0 %602
    %v604 = vsel %vm585, %v581, -inf
    %605 = vmax.xlane.f32.xlu0 %v604
    %v606 = vpop.xlane.xlu0 %605
    %v607 = vsel %vm585, %v583, -inf
    %608 = vmax.xlane.f32.xlu0 %v607
    %v609 = vpop.xlane.xlu0 %608
    %v610 = vsub.f32 %v500, %v588
    %v611 = vsub.f32 %v502, %v591
    %v612 = vsub.f32 %v527, %v594
    %v613 = vsub.f32 %v529, %v597
    %v614 = vsub.f32 %v554, %v600
    %v615 = vsub.f32 %v556, %v603
    %v616 = vsub.f32 %v581, %v606
    %v617 = vsub.f32 %v583, %v609
    %v618 = vmul.f32 %v610, 1.442695
    %v619 = vpow.pop %v618
    %v620 = vmul.f32 %v611, 1.442695
    %v621 = vpow.pop %v620
    %v622 = vmul.f32 %v612, 1.442695
    %v623 = vpow.pop %v622
    %v624 = vmul.f32 %v613, 1.442695
    %v625 = vpow.pop %v624
    %v626 = vmul.f32 %v614, 1.442695
    %v627 = vpow.pop %v626
    %v628 = vmul.f32 %v615, 1.442695
    %v629 = vpow.pop %v628
    %v630 = vmul.f32 %v616, 1.442695
    %v631 = vpow.pop %v630
    %v632 = vmul.f32 %v617, 1.442695
    %v633 = vpow.pop %v632
    %v634 = vsel %vm585, %v619, 0.0
    %635 = vadd.xlane.f32.xlu0 %v634
    %v636 = vpop.xlane.xlu0 %635
    %v637 = vsel %vm585, %v621, 0.0
    %638 = vadd.xlane.f32.xlu0 %v637
    %v639 = vpop.xlane.xlu0 %638
    %v640 = vsel %vm585, %v623, 0.0
    %641 = vadd.xlane.f32.xlu0 %v640
    %v642 = vpop.xlane.xlu0 %641
    %v643 = vsel %vm585, %v625, 0.0
    %644 = vadd.xlane.f32.xlu0 %v643
    %v645 = vpop.xlane.xlu0 %644
    %v646 = vsel %vm585, %v627, 0.0
    %647 = vadd.xlane.f32.xlu0 %v646
    %v648 = vpop.xlane.xlu0 %647
    %v649 = vsel %vm585, %v629, 0.0
    %650 = vadd.xlane.f32.xlu0 %v649
    %v651 = vpop.xlane.xlu0 %650
    %v652 = vsel %vm585, %v631, 0.0
    %653 = vadd.xlane.f32.xlu0 %v652
    %v654 = vpop.xlane.xlu0 %653
    %v655 = vsel %vm585, %v633, 0.0
    %656 = vadd.xlane.f32.xlu0 %v655
    %v657 = vpop.xlane.xlu0 %656
    %v658 = vrcp.pop %v636
    %v659 = vrcp.pop %v639
    %v660 = vrcp.pop %v642
    %v661 = vrcp.pop %v645
    %v662 = vrcp.pop %v648
    %v663 = vrcp.pop %v651
    %v664 = vrcp.pop %v654
    %v665 = vrcp.pop %v657
    %v666 = vmul.f32 %v619, %v658
    %v667 = vmul.f32 %v621, %v659
    %v668 = vmul.f32 %v623, %v660
    %v669 = vmul.f32 %v625, %v661
    %v670 = vmul.f32 %v627, %v662
    %v671 = vmul.f32 %v629, %v663
    %v672 = vmul.f32 %v631, %v664
    %v673 = vmul.f32 %v633, %v665
    %v674 = vpack.c.bf16 %v666, %v666
    %v675 = vpack.c.bf16 %v667, %v667
    %v676 = vpack.c.bf16 %v668, %v668
    %v677 = vpack.c.bf16 %v669, %v669
    %v678 = vpack.c.bf16 %v670, %v670
    %v679 = vpack.c.bf16 %v671, %v671
    %v680 = vpack.c.bf16 %v672, %v672
    %v681 = vpack.c.bf16 %v673, %v673
    %v684 = vunpack.c.l.b16 %v674
    %v685 = vunpack.c.l.b16 %v675
    %v686 = vpack.c.b16 %v685, %v684
    %687 = vrot.lane.b32.xlu0 %v480, 64
    %v688 = vpop.permute.xlu0 %687
    %v691 = vsel %vm585, %v686, 0
    %693 = vmatpush.bf16.msra.mxu0 0
    %694 = vmatpush.bf16.msra.mxu0 0
    %695 = vmatpush.bf16.msra.mxu0 0
    %696 = vmatpush.bf16.msra.mxu0 0
    %697 = vmatpush.bf16.msra.mxu0 0
    %698 = vmatpush.bf16.msra.mxu0 0
    %699 = vmatpush.bf16.msra.mxu0 0
    %700 = vmatpush.bf16.msra.mxu0 %v688
    %701 = vmatmul.bf16.gmra.mxu0 %v691
    %v702 = vpop.f32.mrf.mxu0
    %v703 = vadd.f32 0.0, %v702
    %v704 = vpop.f32.mrf.mxu0
    %v705 = vadd.f32 0.0, %v704
    %706 = vdwg.mxu0
    %v709 = vunpack.c.l.b16 %v676
    %v710 = vunpack.c.l.b16 %v677
    %v711 = vpack.c.b16 %v710, %v709
    %712 = vrot.lane.b32.xlu0 %v508, 64
    %v713 = vpop.permute.xlu0 %712
    %v716 = vsel %vm585, %v711, 0
    %718 = vmatpush.bf16.msra.mxu0 0
    %719 = vmatpush.bf16.msra.mxu0 0
    %720 = vmatpush.bf16.msra.mxu0 0
    %721 = vmatpush.bf16.msra.mxu0 0
    %722 = vmatpush.bf16.msra.mxu0 0
    %723 = vmatpush.bf16.msra.mxu0 0
    %724 = vmatpush.bf16.msra.mxu0 0
    %725 = vmatpush.bf16.msra.mxu0 %v713
    %726 = vmatmul.bf16.gmra.mxu0 %v716
    %v727 = vpop.f32.mrf.mxu0
    %v728 = vadd.f32 0.0, %v727
    %v729 = vpop.f32.mrf.mxu0
    %v730 = vadd.f32 0.0, %v729
    %731 = vdwg.mxu0
    %v734 = vunpack.c.l.b16 %v678
    %v735 = vunpack.c.l.b16 %v679
    %v736 = vpack.c.b16 %v735, %v734
    %737 = vrot.lane.b32.xlu0 %v535, 64
    %v738 = vpop.permute.xlu0 %737
    %v741 = vsel %vm585, %v736, 0
    %743 = vmatpush.bf16.msra.mxu0 0
    %744 = vmatpush.bf16.msra.mxu0 0
    %745 = vmatpush.bf16.msra.mxu0 0
    %746 = vmatpush.bf16.msra.mxu0 0
    %747 = vmatpush.bf16.msra.mxu0 0
    %748 = vmatpush.bf16.msra.mxu0 0
    %749 = vmatpush.bf16.msra.mxu0 0
    %750 = vmatpush.bf16.msra.mxu0 %v738
    %751 = vmatmul.bf16.gmra.mxu0 %v741
    %v752 = vpop.f32.mrf.mxu0
    %v753 = vadd.f32 0.0, %v752
    %v754 = vpop.f32.mrf.mxu0
    %v755 = vadd.f32 0.0, %v754
    %756 = vdwg.mxu0
    %v759 = vunpack.c.l.b16 %v680
    %v760 = vunpack.c.l.b16 %v681
    %v761 = vpack.c.b16 %v760, %v759
    %762 = vrot.lane.b32.xlu0 %v562, 64
    %v763 = vpop.permute.xlu0 %762
    %v766 = vsel %vm585, %v761, 0
    %768 = vmatpush.bf16.msra.mxu0 0
    %769 = vmatpush.bf16.msra.mxu0 0
    %770 = vmatpush.bf16.msra.mxu0 0
    %771 = vmatpush.bf16.msra.mxu0 0
    %772 = vmatpush.bf16.msra.mxu0 0
    %773 = vmatpush.bf16.msra.mxu0 0
    %774 = vmatpush.bf16.msra.mxu0 0
    %775 = vmatpush.bf16.msra.mxu0 %v763
    %776 = vmatmul.bf16.gmra.mxu0 %v766
    %v777 = vpop.f32.mrf.mxu0
    %v778 = vadd.f32 0.0, %v777
    %v779 = vpop.f32.mrf.mxu0
    %v780 = vadd.f32 0.0, %v779
    %781 = vdwg.mxu0
    %784 = vrot.lane.b32.xlu0 %v728, 8
    %v785 = vpop.permute.xlu0 %784
    %786 = vrot.lane.b32.xlu0 %v730, 8
    %v787 = vpop.permute.xlu0 %786
    %792 = vrot.lane.b32.xlu0 %v753, 16
    %v793 = vpop.permute.xlu0 %792
    %794 = vrot.lane.b32.xlu0 %v755, 16
    %v795 = vpop.permute.xlu0 %794
    %800 = vrot.lane.b32.xlu0 %v778, 24
    %v801 = vpop.permute.xlu0 %800
    %802 = vrot.lane.b32.xlu0 %v780, 24
    %v803 = vpop.permute.xlu0 %802
    %v806 = vsel %vm483, %v703, %v785
    %v807 = vsel %vm483, %v705, %v787
    %v808 = vsel %vm585, %v806, %v793
    %v809 = vsel %vm585, %v807, %v795
    %vm810 = vcmask 195584
    %v811 = vsel %vm810, %v808, %v801
    %v812 = vsel %vm810, %v809, %v803
    %v813 = vpack.c.bf16 %v812, %v811
    %v814 = vld [vmem:[%s8] sm:$0xf]
    %v815 = vld [vmem:[%s8 + $0x4] sm:$0xf]
    %v816 = vld [vmem:[%s8 + $0x8] sm:$0xf]
    %v817 = vld [vmem:[%s8 + $0xc] sm:$0xf]
    %v818 = vld [vmem:[#allocation10] sm:$0x1]
    %v820 = vperm.slane %v818, 0
    %v826 = vunpack.c.l.b16 %v814
    %v827 = vunpack.c.l.b16 %v815
    %v828 = vunpack.c.l.b16 %v816
    %v829 = vunpack.c.l.b16 %v817
    %v830 = vpack.c.b16 %v827, %v826
    %v831 = vpack.c.b16 %v829, %v828
    %v835 = vsel %vm346, %v813, 0
    %837 = vmatpush.bf16.msra.mxu0 0
    %838 = vmatpush.bf16.msra.mxu0 0
    %839 = vmatpush.bf16.msra.mxu0 0
    %840 = vmatpush.bf16.msra.mxu0 0
    %841 = vmatpush.bf16.msra.mxu0 0
    %842 = vmatpush.bf16.msra.mxu0 0
    %843 = vmatpush.bf16.msra.mxu0 %v831
    %844 = vmatpush.bf16.msra.mxu0 %v830
    %845 = vmatmul.bf16.gmra.mxu0 %v835
    %v846 = vpop.f32.mrf.mxu0
    %v847 = vadd.f32 %v820, %v846
    %v848 = vpop.f32.mrf.mxu0
    %v849 = vadd.f32 %v820, %v848
    %850 = vdwg.mxu0
    %v851 = vadd.f32 %v847, %v406
    %v852 = vadd.f32 %v849, %v407
    %v853 = vld [vmem:[#allocation11] sm:$0x1]
    %v854 = vld [vmem:[#allocation13] sm:$0x1]
    %v855 = vsel %vm346, %v851, 0.0
    %856 = vadd.xlane.f32.xlu0 %v855
    %v857 = vpop.xlane.xlu0 %856
    %v858 = vsel %vm346, %v852, 0.0
    %859 = vadd.xlane.f32.xlu0 %v858
    %v860 = vpop.xlane.xlu0 %859
    %v861 = vmul.f32 %v857, %v359
    %v862 = vmul.f32 %v860, %v359
    %v863 = vsub.f32 %v851, %v861
    %v864 = vsub.f32 %v852, %v862
    %v865 = vmul.f32 %v863, %v863
    %v866 = vmul.f32 %v864, %v864
    %v867 = vsel %vm346, %v865, 0.0
    %868 = vadd.xlane.f32.xlu0 %v867
    %v869 = vpop.xlane.xlu0 %868
    %v870 = vsel %vm346, %v866, 0.0
    %871 = vadd.xlane.f32.xlu0 %v870
    %v872 = vpop.xlane.xlu0 %871
    %v873 = vmul.f32 %v869, %v359
    %v874 = vmul.f32 %v872, %v359
    %v875 = vadd.f32 %v873, 1e-07
    %v876 = vadd.f32 %v874, 1e-07
    %v877 = vrsqrt.pop %v875
    %v878 = vmul.f32 %v877, %v875
    %v879 = vmul.f32 %v878, %v877
    %v880 = vmul.f32 0.5, %v879
    %v881 = vsub.f32 1.5, %v880
    %v882 = vmul.f32 %v877, %v881
    %vm883 = vweird.f32 %v875
    %vm884 = vweird.f32 %v877
    %vm885 = vmor %vm883, %vm884
    %v886 = vsel %vm885, %v877, %v882
    %v887 = vrsqrt.pop %v876
    %v888 = vmul.f32 %v887, %v876
    %v889 = vmul.f32 %v888, %v887
    %v890 = vmul.f32 0.5, %v889
    %v891 = vsub.f32 1.5, %v890
    %v892 = vmul.f32 %v887, %v891
    %vm893 = vweird.f32 %v876
    %vm894 = vweird.f32 %v887
    %vm895 = vmor %vm893, %vm894
    %v896 = vsel %vm895, %v887, %v892
    %v897 = vmul.f32 %v863, %v886
    %v898 = vmul.f32 %v864, %v896
    %v900 = vperm.slane %v853, 0
    %v902 = vmul.f32 %v897, %v900
    %v903 = vmul.f32 %v898, %v900
    %v905 = vperm.slane %v854, 0
    %v907 = vadd.f32 %v902, %v905
    %v908 = vadd.f32 %v903, %v905
    %v909 = vpack.c.bf16 %v908, %v907
    %v910 = vld [vmem:[%s12] sm:$0xf]
    %v911 = vld [vmem:[%s12 + $0x4] sm:$0xf]
    %v912 = vld [vmem:[%s12 + $0x8] sm:$0xf]
    %v913 = vld [vmem:[%s12 + $0xc] sm:$0xf]
    %v914 = vld [vmem:[#allocation14] sm:$0x1]
    %v916 = vperm.slane %v914, 0
    %v922 = vunpack.c.l.b16 %v910
    %v923 = vunpack.c.l.b16 %v911
    %v924 = vunpack.c.l.b16 %v912
    %v925 = vunpack.c.l.b16 %v913
    %v926 = vpack.c.b16 %v923, %v922
    %v927 = vpack.c.b16 %v925, %v924
    %v931 = vsel %vm346, %v909, 0
    %933 = vmatpush.bf16.msra.mxu0 0
    %934 = vmatpush.bf16.msra.mxu0 0
    %935 = vmatpush.bf16.msra.mxu0 0
    %936 = vmatpush.bf16.msra.mxu0 0
    %937 = vmatpush.bf16.msra.mxu0 0
    %938 = vmatpush.bf16.msra.mxu0 0
    %939 = vmatpush.bf16.msra.mxu0 %v927
    %940 = vmatpush.bf16.msra.mxu0 %v926
    %941 = vmatmul.bf16.gmra.mxu0 %v931
    %v942 = vpop.f32.mrf.mxu0
    %v943 = vadd.f32 %v916, %v942
    %v944 = vpop.f32.mrf.mxu0
    %v945 = vadd.f32 %v916, %v944
    %946 = vdwg.mxu0
    %v947 = vmul.f32 %v943, 0.5
    %v948 = vmul.f32 %v945, 0.5
    %v949 = vmul.f32 %v943, 0.044715
    %v950 = vmul.f32 %v945, 0.044715
    %v951 = vmul.f32 %v949, %v943
    %v952 = vmul.f32 %v950, %v945
    %v953 = vmul.f32 %v951, %v943
    %v954 = vmul.f32 %v952, %v945
    %v955 = vadd.f32 %v943, %v953
    %v956 = vadd.f32 %v945, %v954
    %v957 = vmul.f32 %v955, 0.7978846
    %v958 = vmul.f32 %v956, 0.7978846
    %v959 = vtanh.pop %v957
    %v960 = vtanh.pop %v958
    %v961 = vadd.f32 %v959, 1.0
    %v962 = vadd.f32 %v960, 1.0
    %v963 = vmul.f32 %v947, %v961
    %v964 = vmul.f32 %v948, %v962
    %v965 = vpack.c.bf16 %v964, %v963
    %v966 = vld [vmem:[%s14] sm:$0xf]
    %v967 = vld [vmem:[%s14 + $0x4] sm:$0xf]
    %v968 = vld [vmem:[%s14 + $0x8] sm:$0xf]
    %v969 = vld [vmem:[%s14 + $0xc] sm:$0xf]
    %v970 = vld [vmem:[%s14 + $0x10] sm:$0xf]
    %v971 = vld [vmem:[%s14 + $0x14] sm:$0xf]
    %v972 = vld [vmem:[%s14 + $0x18] sm:$0xf]
    %v973 = vld [vmem:[%s14 + $0x1c] sm:$0xf]
    %v974 = vld [vmem:[#allocation16] sm:$0x1]
    %v976 = vperm.slane %v974, 0
    %v986 = vunpack.c.l.b16 %v966
    %v987 = vunpack.c.l.b16 %v967
    %v988 = vunpack.c.l.b16 %v968
    %v989 = vunpack.c.l.b16 %v969
    %v990 = vunpack.c.l.b16 %v970
    %v991 = vunpack.c.l.b16 %v971
    %v992 = vunpack.c.l.b16 %v972
    %v993 = vunpack.c.l.b16 %v973
    %v994 = vpack.c.b16 %v987, %v986
    %v995 = vpack.c.b16 %v989, %v988
    %v996 = vpack.c.b16 %v991, %v990
    %v997 = vpack.c.b16 %v993, %v992
    %v1003 = vsel %vm326, %v965, 0
    %1005 = vmatpush.bf16.msra.mxu0 0
    %1006 = vmatpush.bf16.msra.mxu0 0
    %1007 = vmatpush.bf16.msra.mxu0 0
    %1008 = vmatpush.bf16.msra.mxu0 0
    %1009 = vmatpush.bf16.msra.mxu0 %v997
    %1010 = vmatpush.bf16.msra.mxu0 %v996
    %1011 = vmatpush.bf16.msra.mxu0 %v995
    %1012 = vmatpush.bf16.msra.mxu0 %v994
    %1013 = vmatmul.bf16.gmra.mxu0 %v1003
    %v1014 = vpop.f32.mrf.mxu0
    %v1015 = vadd.f32 %v976, %v1014
    %v1016 = vpop.f32.mrf.mxu0
    %v1017 = vadd.f32 %v976, %v1016
    %1018 = vdwg.mxu0
    %v1019 = vadd.f32 %v1015, %v907
    %v1020 = vadd.f32 %v1017, %v908
    %v1021 = vld [vmem:[#allocation17] sm:$0x1]
    %v1022 = vld [vmem:[#allocation19] sm:$0x1]
    %v1023 = vsel %vm346, %v1019, 0.0
    %1024 = vadd.xlane.f32.xlu0 %v1023
    %v1025 = vpop.xlane.xlu0 %1024
    %v1026 = vsel %vm346, %v1020, 0.0
    %1027 = vadd.xlane.f32.xlu0 %v1026
    %v1028 = vpop.xlane.xlu0 %1027
    %v1029 = vmul.f32 %v1025, %v359
    %v1030 = vmul.f32 %v1028, %v359
    %v1031 = vsub.f32 %v1019, %v1029
    %v1032 = vsub.f32 %v1020, %v1030
    %v1033 = vmul.f32 %v1031, %v1031
    %v1034 = vmul.f32 %v1032, %v1032
    %v1035 = vsel %vm346, %v1033, 0.0
    %1036 = vadd.xlane.f32.xlu0 %v1035
    %v1037 = vpop.xlane.xlu0 %1036
    %v1038 = vsel %vm346, %v1034, 0.0
    %1039 = vadd.xlane.f32.xlu0 %v1038
    %v1040 = vpop.xlane.xlu0 %1039
    %v1041 = vmul.f32 %v1037, %v359
    %v1042 = vmul.f32 %v1040, %v359
    %v1043 = vadd.f32 %v1041, 1e-07
    %v1044 = vadd.f32 %v1042, 1e-07
    %v1045 = vrsqrt.pop %v1043
    %v1046 = vmul.f32 %v1045, %v1043
    %v1047 = vmul.f32 %v1046, %v1045
    %v1048 = vmul.f32 0.5, %v1047
    %v1049 = vsub.f32 1.5, %v1048
    %v1050 = vmul.f32 %v1045, %v1049
    %vm1051 = vweird.f32 %v1043
    %vm1052 = vweird.f32 %v1045
    %vm1053 = vmor %vm1051, %vm1052
    %v1054 = vsel %vm1053, %v1045, %v1050
    %v1055 = vrsqrt.pop %v1044
    %v1056 = vmul.f32 %v1055, %v1044
    %v1057 = vmul.f32 %v1056, %v1055
    %v1058 = vmul.f32 0.5, %v1057
    %v1059 = vsub.f32 1.5, %v1058
    %v1060 = vmul.f32 %v1055, %v1059
    %vm1061 = vweird.f32 %v1044
    %vm1062 = vweird.f32 %v1055
    %vm1063 = vmor %vm1061, %vm1062
    %v1064 = vsel %vm1063, %v1055, %v1060
    %v1065 = vmul.f32 %v1031, %v1054
    %v1066 = vmul.f32 %v1032, %v1064
    %v1068 = vperm.slane %v1021, 0
    %v1070 = vmul.f32 %v1065, %v1068
    %v1071 = vmul.f32 %v1066, %v1068
    %v1073 = vperm.slane %v1022, 0
    %v1075 = vadd.f32 %v1070, %v1073
    %v1076 = vadd.f32 %v1071, %v1073
    %v1077 = vpack.c.bf16 %v1076, %v1075
    %s1078 = scalar_lea.vmem %s6, 16
    %v1079 = vld [vmem:[%s1078] sm:$0xf]
    %v1080 = vld [vmem:[%s1078 + $0x4] sm:$0xf]
    %v1081 = vld [vmem:[%s1078 + $0x8] sm:$0xf]
    %v1082 = vld [vmem:[%s1078 + $0xc] sm:$0xf]
    %s1083 = scalar_lea.vmem [#allocation8], 1
    %v1084 = vld [vmem:[%s1083] sm:$0x1]
    %v1086 = vperm.slane %v1084, 0
    %v1092 = vunpack.c.l.b16 %v1079
    %v1093 = vunpack.c.l.b16 %v1080
    %v1094 = vunpack.c.l.b16 %v1081
    %v1095 = vunpack.c.l.b16 %v1082
    %v1096 = vpack.c.b16 %v1093, %v1092
    %v1097 = vpack.c.b16 %v1095, %v1094
    %v1101 = vsel %vm346, %v1077, 0
    %1103 = vmatpush.bf16.msra.mxu0 0
    %1104 = vmatpush.bf16.msra.mxu0 0
    %1105 = vmatpush.bf16.msra.mxu0 0
    %1106 = vmatpush.bf16.msra.mxu0 0
    %1107 = vmatpush.bf16.msra.mxu0 0
    %1108 = vmatpush.bf16.msra.mxu0 0
    %1109 = vmatpush.bf16.msra.mxu0 %v1097
    %1110 = vmatpush.bf16.msra.mxu0 %v1096
    %1111 = vmatmul.bf16.gmra.mxu0 %v1101
    %v1112 = vpop.f32.mrf.mxu0
    %v1113 = vadd.f32 %v1086, %v1112
    %v1114 = vpop.f32.mrf.mxu0
    %v1115 = vadd.f32 %v1086, %v1114
    %1116 = vdwg.mxu0
    %1119 = vrot.lane.b32.xlu0 %v1113, 120
    %v1120 = vpop.permute.xlu0 %1119
    %1121 = vrot.lane.b32.xlu0 %v1115, 120
    %v1122 = vpop.permute.xlu0 %1121
    %1125 = vrot.lane.b32.xlu0 %v1113, 112
    %v1126 = vpop.permute.xlu0 %1125
    %1127 = vrot.lane.b32.xlu0 %v1115, 112
    %v1128 = vpop.permute.xlu0 %1127
    %1131 = vrot.lane.b32.xlu0 %v1113, 104
    %v1132 = vpop.permute.xlu0 %1131
    %1133 = vrot.lane.b32.xlu0 %v1115, 104
    %v1134 = vpop.permute.xlu0 %1133
    %v1137 = vpack.c.bf16 %v1113, %v1113
    %v1138 = vpack.c.bf16 %v1115, %v1115
    %v1139 = vpack.c.bf16 %v1120, %v1120
    %v1140 = vpack.c.bf16 %v1122, %v1122
    %v1141 = vpack.c.bf16 %v1126, %v1126
    %v1142 = vpack.c.bf16 %v1128, %v1128
    %v1143 = vpack.c.bf16 %v1132, %v1132
    %v1144 = vpack.c.bf16 %v1134, %v1134
    %v1147 = vunpack.c.l.b16 %v1137
    %v1148 = vunpack.c.l.b16 %v1138
    %v1149 = vpack.c.b16 %v1148, %v1147
    %1150 = vrot.lane.b32.xlu0 %v1149, 96
    %v1151 = vpop.permute.xlu0 %1150
    %v1153 = vsel %vm483, %v1149, 0
    %v1156 = vsel %vm483, %v1151, 0
    %1158 = vmatpush.bf16.xpose.msra.mxu0 0
    %1159 = vmatpush.bf16.xpose.msra.mxu0 0
    %1160 = vmatpush.bf16.xpose.msra.mxu0 0
    %1161 = vmatpush.bf16.xpose.msra.mxu0 0
    %1162 = vmatpush.bf16.xpose.msra.mxu0 0
    %1163 = vmatpush.bf16.xpose.msra.mxu0 0
    %1164 = vmatpush.bf16.xpose.msra.mxu0 0
    %1165 = vmatpush.bf16.xpose.msra.mxu0 %v1156
    %1166 = vmatmul.bf16.gmra.mxu0 %v1153
    %v1167 = vpop.f32.mrf.mxu0
    %v1168 = vadd.f32 %v408, %v1167
    %v1169 = vpop.f32.mrf.mxu0
    %v1170 = vadd.f32 %v409, %v1169
    %1171 = vdwg.mxu0
    %v1174 = vunpack.c.l.b16 %v1139
    %v1175 = vunpack.c.l.b16 %v1140
    %v1176 = vpack.c.b16 %v1175, %v1174
    %1177 = vrot.lane.b32.xlu0 %v1176, 96
    %v1178 = vpop.permute.xlu0 %1177
    %v1180 = vsel %vm483, %v1176, 0
    %v1183 = vsel %vm483, %v1178, 0
    %1185 = vmatpush.bf16.xpose.msra.mxu0 0
    %1186 = vmatpush.bf16.xpose.msra.mxu0 0
    %1187 = vmatpush.bf16.xpose.msra.mxu0 0
    %1188 = vmatpush.bf16.xpose.msra.mxu0 0
    %1189 = vmatpush.bf16.xpose.msra.mxu0 0
    %1190 = vmatpush.bf16.xpose.msra.mxu0 0
    %1191 = vmatpush.bf16.xpose.msra.mxu0 0
    %1192 = vmatpush.bf16.xpose.msra.mxu0 %v1183
    %1193 = vmatmul.bf16.gmra.mxu0 %v1180
    %v1194 = vpop.f32.mrf.mxu0
    %v1195 = vadd.f32 %v408, %v1194
    %v1196 = vpop.f32.mrf.mxu0
    %v1197 = vadd.f32 %v409, %v1196
    %1198 = vdwg.mxu0
    %v1201 = vunpack.c.l.b16 %v1141
    %v1202 = vunpack.c.l.b16 %v1142
    %v1203 = vpack.c.b16 %v1202, %v1201
    %1204 = vrot.lane.b32.xlu0 %v1203, 96
    %v1205 = vpop.permute.xlu0 %1204
    %v1207 = vsel %vm483, %v1203, 0
    %v1210 = vsel %vm483, %v1205, 0
    %1212 = vmatpush.bf16.xpose.msra.mxu0 0
    %1213 = vmatpush.bf16.xpose.msra.mxu0 0
    %1214 = vmatpush.bf16.xpose.msra.mxu0 0
    %1215 = vmatpush.bf16.xpose.msra.mxu0 0
    %1216 = vmatpush.bf16.xpose.msra.mxu0 0
    %1217 = vmatpush.bf16.xpose.msra.mxu0 0
    %1218 = vmatpush.bf16.xpose.msra.mxu0 0
    %1219 = vmatpush.bf16.xpose.msra.mxu0 %v1210
    %1220 = vmatmul.bf16.gmra.mxu0 %v1207
    %v1221 = vpop.f32.mrf.mxu0
    %v1222 = vadd.f32 %v408, %v1221
    %v1223 = vpop.f32.mrf.mxu0
    %v1224 = vadd.f32 %v409, %v1223
    %1225 = vdwg.mxu0
    %v1228 = vunpack.c.l.b16 %v1143
    %v1229 = vunpack.c.l.b16 %v1144
    %v1230 = vpack.c.b16 %v1229, %v1228
    %1231 = vrot.lane.b32.xlu0 %v1230, 96
    %v1232 = vpop.permute.xlu0 %1231
    %v1234 = vsel %vm483, %v1230, 0
    %v1237 = vsel %vm483, %v1232, 0
    %1239 = vmatpush.bf16.xpose.msra.mxu0 0
    %1240 = vmatpush.bf16.xpose.msra.mxu0 0
    %1241 = vmatpush.bf16.xpose.msra.mxu0 0
    %1242 = vmatpush.bf16.xpose.msra.mxu0 0
    %1243 = vmatpush.bf16.xpose.msra.mxu0 0
    %1244 = vmatpush.bf16.xpose.msra.mxu0 0
    %1245 = vmatpush.bf16.xpose.msra.mxu0 0
    %1246 = vmatpush.bf16.xpose.msra.mxu0 %v1237
    %1247 = vmatmul.bf16.gmra.mxu0 %v1234
    %v1248 = vpop.f32.mrf.mxu0
    %v1249 = vadd.f32 %v408, %v1248
    %v1250 = vpop.f32.mrf.mxu0
    %v1251 = vadd.f32 %v409, %v1250
    %1252 = vdwg.mxu0
    %v1253 = vsel %vm585, %v1168, -inf
    %1254 = vmax.xlane.f32.xlu0 %v1253
    %v1255 = vpop.xlane.xlu0 %1254
    %v1256 = vsel %vm585, %v1170, -inf
    %1257 = vmax.xlane.f32.xlu0 %v1256
    %v1258 = vpop.xlane.xlu0 %1257
    %v1259 = vsel %vm585, %v1195, -inf
    %1260 = vmax.xlane.f32.xlu0 %v1259
    %v1261 = vpop.xlane.xlu0 %1260
    %v1262 = vsel %vm585, %v1197, -inf
    %1263 = vmax.xlane.f32.xlu0 %v1262
    %v1264 = vpop.xlane.xlu0 %1263
    %v1265 = vsel %vm585, %v1222, -inf
    %1266 = vmax.xlane.f32.xlu0 %v1265
    %v1267 = vpop.xlane.xlu0 %1266
    %v1268 = vsel %vm585, %v1224, -inf
    %1269 = vmax.xlane.f32.xlu0 %v1268
    %v1270 = vpop.xlane.xlu0 %1269
    %v1271 = vsel %vm585, %v1249, -inf
    %1272 = vmax.xlane.f32.xlu0 %v1271
    %v1273 = vpop.xlane.xlu0 %1272
    %v1274 = vsel %vm585, %v1251, -inf
    %1275 = vmax.xlane.f32.xlu0 %v1274
    %v1276 = vpop.xlane.xlu0 %1275
    %v1277 = vsub.f32 %v1168, %v1255
    %v1278 = vsub.f32 %v1170, %v1258
    %v1279 = vsub.f32 %v1195, %v1261
    %v1280 = vsub.f32 %v1197, %v1264
    %v1281 = vsub.f32 %v1222, %v1267
    %v1282 = vsub.f32 %v1224, %v1270
    %v1283 = vsub.f32 %v1249, %v1273
    %v1284 = vsub.f32 %v1251, %v1276
    %v1285 = vmul.f32 %v1277, 1.442695
    %v1286 = vpow.pop %v1285
    %v1287 = vmul.f32 %v1278, 1.442695
    %v1288 = vpow.pop %v1287
    %v1289 = vmul.f32 %v1279, 1.442695
    %v1290 = vpow.pop %v1289
    %v1291 = vmul.f32 %v1280, 1.442695
    %v1292 = vpow.pop %v1291
    %v1293 = vmul.f32 %v1281, 1.442695
    %v1294 = vpow.pop %v1293
    %v1295 = vmul.f32 %v1282, 1.442695
    %v1296 = vpow.pop %v1295
    %v1297 = vmul.f32 %v1283, 1.442695
    %v1298 = vpow.pop %v1297
    %v1299 = vmul.f32 %v1284, 1.442695
    %v1300 = vpow.pop %v1299
    %v1301 = vsel %vm585, %v1286, 0.0
    %1302 = vadd.xlane.f32.xlu0 %v1301
    %v1303 = vpop.xlane.xlu0 %1302
    %v1304 = vsel %vm585, %v1288, 0.0
    %1305 = vadd.xlane.f32.xlu0 %v1304
    %v1306 = vpop.xlane.xlu0 %1305
    %v1307 = vsel %vm585, %v1290, 0.0
    %1308 = vadd.xlane.f32.xlu0 %v1307
    %v1309 = vpop.xlane.xlu0 %1308
    %v1310 = vsel %vm585, %v1292, 0.0
    %1311 = vadd.xlane.f32.xlu0 %v1310
    %v1312 = vpop.xlane.xlu0 %1311
    %v1313 = vsel %vm585, %v1294, 0.0
    %1314 = vadd.xlane.f32.xlu0 %v1313
    %v1315 = vpop.xlane.xlu0 %1314
    %v1316 = vsel %vm585, %v1296, 0.0
    %1317 = vadd.xlane.f32.xlu0 %v1316
    %v1318 = vpop.xlane.xlu0 %1317
    %v1319 = vsel %vm585, %v1298, 0.0
    %1320 = vadd.xlane.f32.xlu0 %v1319
    %v1321 = vpop.xlane.xlu0 %1320
    %v1322 = vsel %vm585, %v1300, 0.0
    %1323 = vadd.xlane.f32.xlu0 %v1322
    %v1324 = vpop.xlane.xlu0 %1323
    %v1325 = vrcp.pop %v1303
    %v1326 = vrcp.pop %v1306
    %v1327 = vrcp.pop %v1309
    %v1328 = vrcp.pop %v1312
    %v1329 = vrcp.pop %v1315
    %v1330 = vrcp.pop %v1318
    %v1331 = vrcp.pop %v1321
    %v1332 = vrcp.pop %v1324
    %v1333 = vmul.f32 %v1286, %v1325
    %v1334 = vmul.f32 %v1288, %v1326
    %v1335 = vmul.f32 %v1290, %v1327
    %v1336 = vmul.f32 %v1292, %v1328
    %v1337 = vmul.f32 %v1294, %v1329
    %v1338 = vmul.f32 %v1296, %v1330
    %v1339 = vmul.f32 %v1298, %v1331
    %v1340 = vmul.f32 %v1300, %v1332
    %v1341 = vpack.c.bf16 %v1333, %v1333
    %v1342 = vpack.c.bf16 %v1334, %v1334
    %v1343 = vpack.c.bf16 %v1335, %v1335
    %v1344 = vpack.c.bf16 %v1336, %v1336
    %v1345 = vpack.c.bf16 %v1337, %v1337
    %v1346 = vpack.c.bf16 %v1338, %v1338
    %v1347 = vpack.c.bf16 %v1339, %v1339
    %v1348 = vpack.c.bf16 %v1340, %v1340
    %v1351 = vunpack.c.l.b16 %v1341
    %v1352 = vunpack.c.l.b16 %v1342
    %v1353 = vpack.c.b16 %v1352, %v1351
    %1354 = vrot.lane.b32.xlu0 %v1149, 64
    %v1355 = vpop.permute.xlu0 %1354
    %v1358 = vsel %vm585, %v1353, 0
    %1360 = vmatpush.bf16.msra.mxu0 0
    %1361 = vmatpush.bf16.msra.mxu0 0
    %1362 = vmatpush.bf16.msra.mxu0 0
    %1363 = vmatpush.bf16.msra.mxu0 0
    %1364 = vmatpush.bf16.msra.mxu0 0
    %1365 = vmatpush.bf16.msra.mxu0 0
    %1366 = vmatpush.bf16.msra.mxu0 0
    %1367 = vmatpush.bf16.msra.mxu0 %v1355
    %1368 = vmatmul.bf16.gmra.mxu0 %v1358
    %v1369 = vpop.f32.mrf.mxu0
    %v1370 = vadd.f32 0.0, %v1369
    %v1371 = vpop.f32.mrf.mxu0
    %v1372 = vadd.f32 0.0, %v1371
    %1373 = vdwg.mxu0
    %v1376 = vunpack.c.l.b16 %v1343
    %v1377 = vunpack.c.l.b16 %v1344
    %v1378 = vpack.c.b16 %v1377, %v1376
    %1379 = vrot.lane.b32.xlu0 %v1176, 64
    %v1380 = vpop.permute.xlu0 %1379
    %v1383 = vsel %vm585, %v1378, 0
    %1385 = vmatpush.bf16.msra.mxu0 0
    %1386 = vmatpush.bf16.msra.mxu0 0
    %1387 = vmatpush.bf16.msra.mxu0 0
    %1388 = vmatpush.bf16.msra.mxu0 0
    %1389 = vmatpush.bf16.msra.mxu0 0
    %1390 = vmatpush.bf16.msra.mxu0 0
    %1391 = vmatpush.bf16.msra.mxu0 0
    %1392 = vmatpush.bf16.msra.mxu0 %v1380
    %1393 = vmatmul.bf16.gmra.mxu0 %v1383
    %v1394 = vpop.f32.mrf.mxu0
    %v1395 = vadd.f32 0.0, %v1394
    %v1396 = vpop.f32.mrf.mxu0
    %v1397 = vadd.f32 0.0, %v1396
    %1398 = vdwg.mxu0
    %v1401 = vunpack.c.l.b16 %v1345
    %v1402 = vunpack.c.l.b16 %v1346
    %v1403 = vpack.c.b16 %v1402, %v1401
    %1404 = vrot.lane.b32.xlu0 %v1203, 64
    %v1405 = vpop.permute.xlu0 %1404
    %v1408 = vsel %vm585, %v1403, 0
    %1410 = vmatpush.bf16.msra.mxu0 0
    %1411 = vmatpush.bf16.msra.mxu0 0
    %1412 = vmatpush.bf16.msra.mxu0 0
    %1413 = vmatpush.bf16.msra.mxu0 0
    %1414 = vmatpush.bf16.msra.mxu0 0
    %1415 = vmatpush.bf16.msra.mxu0 0
    %1416 = vmatpush.bf16.msra.mxu0 0
    %1417 = vmatpush.bf16.msra.mxu0 %v1405
    %1418 = vmatmul.bf16.gmra.mxu0 %v1408
    %v1419 = vpop.f32.mrf.mxu0
    %v1420 = vadd.f32 0.0, %v1419
    %v1421 = vpop.f32.mrf.mxu0
    %v1422 = vadd.f32 0.0, %v1421
    %1423 = vdwg.mxu0
    %v1426 = vunpack.c.l.b16 %v1347
    %v1427 = vunpack.c.l.b16 %v1348
    %v1428 = vpack.c.b16 %v1427, %v1426
    %1429 = vrot.lane.b32.xlu0 %v1230, 64
    %v1430 = vpop.permute.xlu0 %1429
    %v1433 = vsel %vm585, %v1428, 0
    %1435 = vmatpush.bf16.msra.mxu0 0
    %1436 = vmatpush.bf16.msra.mxu0 0
    %1437 = vmatpush.bf16.msra.mxu0 0
    %1438 = vmatpush.bf16.msra.mxu0 0
    %1439 = vmatpush.bf16.msra.mxu0 0
    %1440 = vmatpush.bf16.msra.mxu0 0
    %1441 = vmatpush.bf16.msra.mxu0 0
    %1442 = vmatpush.bf16.msra.mxu0 %v1430
    %1443 = vmatmul.bf16.gmra.mxu0 %v1433
    %v1444 = vpop.f32.mrf.mxu0
    %v1445 = vadd.f32 0.0, %v1444
    %v1446 = vpop.f32.mrf.mxu0
    %v1447 = vadd.f32 0.0, %v1446
    %1448 = vdwg.mxu0
    %1451 = vrot.lane.b32.xlu0 %v1395, 8
    %v1452 = vpop.permute.xlu0 %1451
    %1453 = vrot.lane.b32.xlu0 %v1397, 8
    %v1454 = vpop.permute.xlu0 %1453
    %1459 = vrot.lane.b32.xlu0 %v1420, 16
    %v1460 = vpop.permute.xlu0 %1459
    %1461 = vrot.lane.b32.xlu0 %v1422, 16
    %v1462 = vpop.permute.xlu0 %1461
    %1467 = vrot.lane.b32.xlu0 %v1445, 24
    %v1468 = vpop.permute.xlu0 %1467
    %1469 = vrot.lane.b32.xlu0 %v1447, 24
    %v1470 = vpop.permute.xlu0 %1469
    %v1473 = vsel %vm483, %v1370, %v1452
    %v1474 = vsel %vm483, %v1372, %v1454
    %v1475 = vsel %vm585, %v1473, %v1460
    %v1476 = vsel %vm585, %v1474, %v1462
    %v1477 = vsel %vm810, %v1475, %v1468
    %v1478 = vsel %vm810, %v1476, %v1470
    %v1479 = vpack.c.bf16 %v1478, %v1477
    %s1480 = scalar_lea.vmem %s8, 16
    %v1481 = vld [vmem:[%s1480] sm:$0xf]
    %v1482 = vld [vmem:[%s1480 + $0x4] sm:$0xf]
    %v1483 = vld [vmem:[%s1480 + $0x8] sm:$0xf]
    %v1484 = vld [vmem:[%s1480 + $0xc] sm:$0xf]
    %s1485 = scalar_lea.vmem [#allocation10], 1
    %v1486 = vld [vmem:[%s1485] sm:$0x1]
    %v1488 = vperm.slane %v1486, 0
    %v1494 = vunpack.c.l.b16 %v1481
    %v1495 = vunpack.c.l.b16 %v1482
    %v1496 = vunpack.c.l.b16 %v1483
    %v1497 = vunpack.c.l.b16 %v1484
    %v1498 = vpack.c.b16 %v1495, %v1494
    %v1499 = vpack.c.b16 %v1497, %v1496
    %v1503 = vsel %vm346, %v1479, 0
    %1505 = vmatpush.bf16.msra.mxu0 0
    %1506 = vmatpush.bf16.msra.mxu0 0
    %1507 = vmatpush.bf16.msra.mxu0 0
    %1508 = vmatpush.bf16.msra.mxu0 0
    %1509 = vmatpush.bf16.msra.mxu0 0
    %1510 = vmatpush.bf16.msra.mxu0 0
    %1511 = vmatpush.bf16.msra.mxu0 %v1499
    %1512 = vmatpush.bf16.msra.mxu0 %v1498
    %1513 = vmatmul.bf16.gmra.mxu0 %v1503
    %v1514 = vpop.f32.mrf.mxu0
    %v1515 = vadd.f32 %v1488, %v1514
    %v1516 = vpop.f32.mrf.mxu0
    %v1517 = vadd.f32 %v1488, %v1516
    %1518 = vdwg.mxu0
    %v1519 = vadd.f32 %v1515, %v1075
    %v1520 = vadd.f32 %v1517, %v1076
    %s1521 = scalar_lea.vmem [#allocation11], 1
    %v1522 = vld [vmem:[%s1521] sm:$0x1]
    %s1523 = scalar_lea.vmem [#allocation13], 1
    %v1524 = vld [vmem:[%s1523] sm:$0x1]
    %v1525 = vsel %vm346, %v1519, 0.0
    %1526 = vadd.xlane.f32.xlu0 %v1525
    %v1527 = vpop.xlane.xlu0 %1526
    %v1528 = vsel %vm346, %v1520, 0.0
    %1529 = vadd.xlane.f32.xlu0 %v1528
    %v1530 = vpop.xlane.xlu0 %1529
    %v1531 = vmul.f32 %v1527, %v359
    %v1532 = vmul.f32 %v1530, %v359
    %v1533 = vsub.f32 %v1519, %v1531
    %v1534 = vsub.f32 %v1520, %v1532
    %v1535 = vmul.f32 %v1533, %v1533
    %v1536 = vmul.f32 %v1534, %v1534
    %v1537 = vsel %vm346, %v1535, 0.0
    %1538 = vadd.xlane.f32.xlu0 %v1537
    %v1539 = vpop.xlane.xlu0 %1538
    %v1540 = vsel %vm346, %v1536, 0.0
    %1541 = vadd.xlane.f32.xlu0 %v1540
    %v1542 = vpop.xlane.xlu0 %1541
    %v1543 = vmul.f32 %v1539, %v359
    %v1544 = vmul.f32 %v1542, %v359
    %v1545 = vadd.f32 %v1543, 1e-07
    %v1546 = vadd.f32 %v1544, 1e-07
    %v1547 = vrsqrt.pop %v1545
    %v1548 = vmul.f32 %v1547, %v1545
    %v1549 = vmul.f32 %v1548, %v1547
    %v1550 = vmul.f32 0.5, %v1549
    %v1551 = vsub.f32 1.5, %v1550
    %v1552 = vmul.f32 %v1547, %v1551
    %vm1553 = vweird.f32 %v1545
    %vm1554 = vweird.f32 %v1547
    %vm1555 = vmor %vm1553, %vm1554
    %v1556 = vsel %vm1555, %v1547, %v1552
    %v1557 = vrsqrt.pop %v1546
    %v1558 = vmul.f32 %v1557, %v1546
    %v1559 = vmul.f32 %v1558, %v1557
    %v1560 = vmul.f32 0.5, %v1559
    %v1561 = vsub.f32 1.5, %v1560
    %v1562 = vmul.f32 %v1557, %v1561
    %vm1563 = vweird.f32 %v1546
    %vm1564 = vweird.f32 %v1557
    %vm1565 = vmor %vm1563, %vm1564
    %v1566 = vsel %vm1565, %v1557, %v1562
    %v1567 = vmul.f32 %v1533, %v1556
    %v1568 = vmul.f32 %v1534, %v1566
    %v1570 = vperm.slane %v1522, 0
    %v1572 = vmul.f32 %v1567, %v1570
    %v1573 = vmul.f32 %v1568, %v1570
    %v1575 = vperm.slane %v1524, 0
    %v1577 = vadd.f32 %v1572, %v1575
    %v1578 = vadd.f32 %v1573, %v1575
    %v1579 = vpack.c.bf16 %v1578, %v1577
    %s1580 = scalar_lea.vmem %s12, 16
    %v1581 = vld [vmem:[%s1580] sm:$0xf]
    %v1582 = vld [vmem:[%s1580 + $0x4] sm:$0xf]
    %v1583 = vld [vmem:[%s1580 + $0x8] sm:$0xf]
    %v1584 = vld [vmem:[%s1580 + $0xc] sm:$0xf]
    %s1585 = scalar_lea.vmem [#allocation14], 1
    %v1586 = vld [vmem:[%s1585] sm:$0x1]
    %v1588 = vperm.slane %v1586, 0
    %v1594 = vunpack.c.l.b16 %v1581
    %v1595 = vunpack.c.l.b16 %v1582
    %v1596 = vunpack.c.l.b16 %v1583
    %v1597 = vunpack.c.l.b16 %v1584
    %v1598 = vpack.c.b16 %v1595, %v1594
    %v1599 = vpack.c.b16 %v1597, %v1596
    %v1603 = vsel %vm346, %v1579, 0
    %1605 = vmatpush.bf16.msra.mxu0 0
    %1606 = vmatpush.bf16.msra.mxu0 0
    %1607 = vmatpush.bf16.msra.mxu0 0
    %1608 = vmatpush.bf16.msra.mxu0 0
    %1609 = vmatpush.bf16.msra.mxu0 0
    %1610 = vmatpush.bf16.msra.mxu0 0
    %1611 = vmatpush.bf16.msra.mxu0 %v1599
    %1612 = vmatpush.bf16.msra.mxu0 %v1598
    %1613 = vmatmul.bf16.gmra.mxu0 %v1603
    %v1614 = vpop.f32.mrf.mxu0
    %v1615 = vadd.f32 %v1588, %v1614
    %v1616 = vpop.f32.mrf.mxu0
    %v1617 = vadd.f32 %v1588, %v1616
    %1618 = vdwg.mxu0
    %v1619 = vmul.f32 %v1615, 0.5
    %v1620 = vmul.f32 %v1617, 0.5
    %v1621 = vmul.f32 %v1615, 0.044715
    %v1622 = vmul.f32 %v1617, 0.044715
    %v1623 = vmul.f32 %v1621, %v1615
    %v1624 = vmul.f32 %v1622, %v1617
    %v1625 = vmul.f32 %v1623, %v1615
    %v1626 = vmul.f32 %v1624, %v1617
    %v1627 = vadd.f32 %v1615, %v1625
    %v1628 = vadd.f32 %v1617, %v1626
    %v1629 = vmul.f32 %v1627, 0.7978846
    %v1630 = vmul.f32 %v1628, 0.7978846
    %v1631 = vtanh.pop %v1629
    %v1632 = vtanh.pop %v1630
    %v1633 = vadd.f32 %v1631, 1.0
    %v1634 = vadd.f32 %v1632, 1.0
    %v1635 = vmul.f32 %v1619, %v1633
    %v1636 = vmul.f32 %v1620, %v1634
    %v1637 = vpack.c.bf16 %v1636, %v1635
    %s1638 = scalar_lea.vmem %s14, 32
    %v1639 = vld [vmem:[%s1638] sm:$0xf]
    %v1640 = vld [vmem:[%s1638 + $0x4] sm:$0xf]
    %v1641 = vld [vmem:[%s1638 + $0x8] sm:$0xf]
    %v1642 = vld [vmem:[%s1638 + $0xc] sm:$0xf]
    %v1643 = vld [vmem:[%s1638 + $0x10] sm:$0xf]
    %v1644 = vld [vmem:[%s1638 + $0x14] sm:$0xf]
    %v1645 = vld [vmem:[%s1638 + $0x18] sm:$0xf]
    %v1646 = vld [vmem:[%s1638 + $0x1c] sm:$0xf]
    %s1647 = scalar_lea.vmem [#allocation16], 1
    %v1648 = vld [vmem:[%s1647] sm:$0x1]
    %v1650 = vperm.slane %v1648, 0
    %v1660 = vunpack.c.l.b16 %v1639
    %v1661 = vunpack.c.l.b16 %v1640
    %v1662 = vunpack.c.l.b16 %v1641
    %v1663 = vunpack.c.l.b16 %v1642
    %v1664 = vunpack.c.l.b16 %v1643
    %v1665 = vunpack.c.l.b16 %v1644
    %v1666 = vunpack.c.l.b16 %v1645
    %v1667 = vunpack.c.l.b16 %v1646
    %v1668 = vpack.c.b16 %v1661, %v1660
    %v1669 = vpack.c.b16 %v1663, %v1662
    %v1670 = vpack.c.b16 %v1665, %v1664
    %v1671 = vpack.c.b16 %v1667, %v1666
    %v1677 = vsel %vm326, %v1637, 0
    %1679 = vmatpush.bf16.msra.mxu0 0
    %1680 = vmatpush.bf16.msra.mxu0 0
    %1681 = vmatpush.bf16.msra.mxu0 0
    %1682 = vmatpush.bf16.msra.mxu0 0
    %1683 = vmatpush.bf16.msra.mxu0 %v1671
    %1684 = vmatpush.bf16.msra.mxu0 %v1670
    %1685 = vmatpush.bf16.msra.mxu0 %v1669
    %1686 = vmatpush.bf16.msra.mxu0 %v1668
    %1687 = vmatmul.bf16.gmra.mxu0 %v1677
    %v1688 = vpop.f32.mrf.mxu0
    %v1689 = vadd.f32 %v1650, %v1688
    %v1690 = vpop.f32.mrf.mxu0
    %v1691 = vadd.f32 %v1650, %v1690
    %1692 = vdwg.mxu0
    %v1693 = vadd.f32 %v1689, %v1577
    %v1694 = vadd.f32 %v1691, %v1578
    %s1695 = scalar_lea.vmem [#allocation17], 1
    %v1696 = vld [vmem:[%s1695] sm:$0x1]
    %s1697 = scalar_lea.vmem [#allocation19], 1
    %v1698 = vld [vmem:[%s1697] sm:$0x1]
    %v1699 = vsel %vm346, %v1693, 0.0
    %1700 = vadd.xlane.f32.xlu0 %v1699
    %v1701 = vpop.xlane.xlu0 %1700
    %v1702 = vsel %vm346, %v1694, 0.0
    %1703 = vadd.xlane.f32.xlu0 %v1702
    %v1704 = vpop.xlane.xlu0 %1703
    %v1705 = vmul.f32 %v1701, %v359
    %v1706 = vmul.f32 %v1704, %v359
    %v1707 = vsub.f32 %v1693, %v1705
    %v1708 = vsub.f32 %v1694, %v1706
    %v1709 = vmul.f32 %v1707, %v1707
    %v1710 = vmul.f32 %v1708, %v1708
    %v1711 = vsel %vm346, %v1709, 0.0
    %1712 = vadd.xlane.f32.xlu0 %v1711
    %v1713 = vpop.xlane.xlu0 %1712
    %v1714 = vsel %vm346, %v1710, 0.0
    %1715 = vadd.xlane.f32.xlu0 %v1714
    %v1716 = vpop.xlane.xlu0 %1715
    %v1717 = vmul.f32 %v1713, %v359
    %v1718 = vmul.f32 %v1716, %v359
    %v1719 = vadd.f32 %v1717, 1e-07
    %v1720 = vadd.f32 %v1718, 1e-07
    %v1721 = vrsqrt.pop %v1719
    %v1722 = vmul.f32 %v1721, %v1719
    %v1723 = vmul.f32 %v1722, %v1721
    %v1724 = vmul.f32 0.5, %v1723
    %v1725 = vsub.f32 1.5, %v1724
    %v1726 = vmul.f32 %v1721, %v1725
    %vm1727 = vweird.f32 %v1719
    %vm1728 = vweird.f32 %v1721
    %vm1729 = vmor %vm1727, %vm1728
    %v1730 = vsel %vm1729, %v1721, %v1726
    %v1731 = vrsqrt.pop %v1720
    %v1732 = vmul.f32 %v1731, %v1720
    %v1733 = vmul.f32 %v1732, %v1731
    %v1734 = vmul.f32 0.5, %v1733
    %v1735 = vsub.f32 1.5, %v1734
    %v1736 = vmul.f32 %v1731, %v1735
    %vm1737 = vweird.f32 %v1720
    %vm1738 = vweird.f32 %v1731
    %vm1739 = vmor %vm1737, %vm1738
    %v1740 = vsel %vm1739, %v1731, %v1736
    %v1741 = vmul.f32 %v1707, %v1730
    %v1742 = vmul.f32 %v1708, %v1740
    %v1744 = vperm.slane %v1696, 0
    %v1746 = vmul.f32 %v1741, %v1744
    %v1747 = vmul.f32 %v1742, %v1744
    %v1749 = vperm.slane %v1698, 0
    %v1751 = vadd.f32 %v1746, %v1749
    %v1752 = vadd.f32 %v1747, %v1749
    %v1753 = vlaneseq
    %v1754 = vshrl.u32 %v1753, 7
    %v1755 = vmul.u32 %v1754, 8
    %vm1756 = vcmp.eq.s32.totalorder %v278, %v1755
    %v1757 = vsel %vm1756, 1, 0
    %v1758 = vcvt.s32.f32 %v1757
    %v1759 = vpack.c.bf16 %v1758, %v1758
    %v1760 = vpack.c.bf16 %v1752, %v1751
    %v1762 = vsel %vm585, %v1759, 0
    %1764 = vmatpush.bf16.msra.mxu0 0
    %1765 = vmatpush.bf16.msra.mxu0 0
    %1766 = vmatpush.bf16.msra.mxu0 0
    %1767 = vmatpush.bf16.msra.mxu0 0
    %1768 = vmatpush.bf16.msra.mxu0 0
    %1769 = vmatpush.bf16.msra.mxu0 0
    %1770 = vmatpush.bf16.msra.mxu0 0
    %1771 = vmatpush.bf16.msra.mxu0 %v1760
    %1772 = vmatmul.bf16.gmra.mxu0 %v1762
    %v1773 = vpop.f32.mrf.mxu0
    %v1774 = vadd.f32 0.0, %v1773
    %v1775 = vpop.f32.mrf.mxu0
    %1776 = vdwg.mxu0
    %v1777 = vpack.c.bf16 %v1774, %v1774
    %v1778 = vld [vmem:[%s18] sm:$0xf]
    %v1779 = vld [vmem:[%s18 + $0x4] sm:$0xf]
    %v1780 = vld [vmem:[%s18 + $0x8] sm:$0xf]
    %v1781 = vld [vmem:[%s18 + $0xc] sm:$0xf]
    %v1782 = vld [vmem:[#allocation20] sm:$0x1]
    %v1784 = vperm.slane %v1782, 0
    %v1790 = vunpack.c.l.b16 %v1778
    %v1791 = vunpack.c.l.b16 %v1779
    %v1792 = vunpack.c.l.b16 %v1780
    %v1793 = vunpack.c.l.b16 %v1781
    %v1794 = vpack.c.b16 %v1791, %v1790
    %v1795 = vpack.c.b16 %v1793, %v1792
    %v1799 = vsel %vm346, %v1777, 0
    %1801 = vmatpush.bf16.msra.mxu0 0
    %1802 = vmatpush.bf16.msra.mxu0 0
    %1803 = vmatpush.bf16.msra.mxu0 0
    %1804 = vmatpush.bf16.msra.mxu0 0
    %1805 = vmatpush.bf16.msra.mxu0 0
    %1806 = vmatpush.bf16.msra.mxu0 0
    %1807 = vmatpush.bf16.msra.mxu0 %v1795
    %1808 = vmatpush.bf16.msra.mxu0 %v1794
    %1809 = vmatmul.bf16.gmra.mxu0 %v1799
    %v1810 = vpop.f32.mrf.mxu0
    %v1811 = vadd.f32 %v1784, %v1810
    %v1812 = vpop.f32.mrf.mxu0
    %1813 = vdwg.mxu0
    %v1814 = vmul.f32 %v1811, 0.5
    %v1815 = vmul.f32 %v1811, 0.044715
    %v1816 = vmul.f32 %v1815, %v1811
    %v1817 = vmul.f32 %v1816, %v1811
    %v1818 = vadd.f32 %v1811, %v1817
    %v1819 = vmul.f32 %v1818, 0.7978846
    %v1820 = vtanh.pop %v1819
    %v1821 = vadd.f32 %v1820, 1.0
    %v1822 = vmul.f32 %v1814, %v1821
    %v1823 = vpack.c.bf16 %v1822, %v1822
    %v1824 = vld [vmem:[#allocation22] sm:$0xf]
    %v1825 = vld [vmem:[#allocation22 + $0x4] sm:$0xf]
    %v1826 = vld [vmem:[#allocation22 + $0x8] sm:$0xf]
    %v1827 = vld [vmem:[#allocation22 + $0xc] sm:$0xf]
    %v1828 = vld [vmem:[%s21] sm:$0x1]
    %v1830 = vperm.slane %v1828, 0
    %v1836 = vunpack.c.l.b16 %v1824
    %v1837 = vunpack.c.l.b16 %v1825
    %v1838 = vunpack.c.l.b16 %v1826
    %v1839 = vunpack.c.l.b16 %v1827
    %v1840 = vpack.c.b16 %v1837, %v1836
    %v1841 = vpack.c.b16 %v1839, %v1838
    %v1845 = vsel %vm346, %v1823, 0
    %1847 = vmatpush.bf16.msra.mxu0 0
    %1848 = vmatpush.bf16.msra.mxu0 0
    %1849 = vmatpush.bf16.msra.mxu0 0
    %1850 = vmatpush.bf16.msra.mxu0 0
    %1851 = vmatpush.bf16.msra.mxu0 0
    %1852 = vmatpush.bf16.msra.mxu0 0
    %1853 = vmatpush.bf16.msra.mxu0 %v1841
    %1854 = vmatpush.bf16.msra.mxu0 %v1840
    %1855 = vmatmul.bf16.gmra.mxu0 %v1845
    %v1856 = vpop.f32.mrf.mxu0
    %v1857 = vadd.f32 %v1830, %v1856
    %v1858 = vpop.f32.mrf.mxu0
    %1859 = vdwg.mxu0
    %vm1860 = vcmask 17408
    %v1861 = vsel %vm1860, %v1857, -inf
    %1862 = vmax.xlane.f32.xlu0 %v1861
    %v1863 = vpop.xlane.xlu0 %1862
    %v1864 = vsub.f32 %v1857, %v1863
    %v1865 = vmul.f32 %v1864, 1.442695
    %v1866 = vpow.pop %v1865
    %v1867 = vsel %vm1860, %v1866, 0.0
    %1868 = vadd.xlane.f32.xlu0 %v1867
    %v1869 = vpop.xlane.xlu0 %1868
    %v1870 = vlog2.pop %v1869
    %v1871 = vmul.f32 %v1870, 0.6931472
    %v1872 = vadd.f32 %v1863, %v1871
    %v1873 = vsub.f32 %v1857, %v1872
    %v1874 = vld [vmem:[%s23] sm:$0x3]
    %v1875 = vmul.f32 %v1874, %v1873
    %v1876 = vsel %vm1860, %v1875, 0.0
    %1877 = vadd.xlane.f32.xlu0 %v1876
    %v1878 = vpop.xlane.xlu0 %1877
    %v1879 = vld [vmem:[%s22] sm:$0x1]
    %v1881 = vperm.slane %v1879, 0
    %v1883 = vmul.f32 %v1874, %v1881
    %v1884 = vsel %vm1860, %v1883, 0.0
    %1885 = vadd.xlane.f32.xlu0 %v1884
    %v1886 = vpop.xlane.xlu0 %1885
    %v1887 = vmul.f32 %v1886, %v1878
    %vm1888 = vcmask 1041408
    %v1889 = vsel %vm1888, %v1887, 0.0
    %v1890 = vrot.slane %v1889, 4
    %v1891 = vadd.f32 %v1889, %v1890
    %v1892 = vrot.slane %v1891, 2
    %v1893 = vadd.f32 %v1891, %v1892
    %v1894 = vrot.slane %v1893, 1
    %v1895 = vadd.f32 %v1893, %v1894
    %v1896 = vsel %vm1888, %v1886, 0.0
    %v1897 = vrot.slane %v1896, 4
    %v1898 = vadd.f32 %v1896, %v1897
    %v1899 = vrot.slane %v1898, 2
    %v1900 = vadd.f32 %v1898, %v1899
    %v1901 = vrot.slane %v1900, 1
    %v1902 = vadd.f32 %v1900, %v1901
    %v1903 = vrcp.pop %v1902
    %v1904 = vmul.f32 %v1902, %v1903
    %v1905 = vsub.f32 1.0, %v1904
    %v1906 = vmul.f32 %v1903, %v1905
    %v1907 = vadd.f32 %v1903, %v1906
    %vm1908 = vweird.f32 %v1902
    %vm1909 = vweird.f32 %v1903
    %vm1910 = vmor %vm1908, %vm1909
    %v1911 = vsel %vm1910, %v1903, %v1907
    %v1912 = vand.u32 2147483647, %v1902
    %vm1913 = vcmp.eq.f32.partialorder %v1912, 8.507059e+37
    %v1914 = vand.u32 %v1902, 2147483648
    %v1915 = vor.u32 1.1754944e-38, %v1914
    %v1916 = vsel %vm1913, %v1915, %v1911
    %v1917 = vmul.f32 %v1895, %v1916
    %v1918 = vsub.f32 0.0, %v1917
    %vm1919 = vcmp.eq.s32.totalorder %v278, 3
    %v1920 = vsel %vm1919, %v1918, %v1857
    %1921 = vst [vmem:[#allocation23] sm:$0x3] %v1920
    // Predicated region
    $region150: #{tpu_custom_call.1} parent=1 // pred_check
      _
    $region151: #{tpu_custom_call.1} parent=1 // pred_check_branch
      %1923 = sbr.rel (0) target = $region153
    $region152: #{tpu_custom_call.1} parent=1 // pred_region
      %1925 = vsyncadd [#allocation4], 0
      %s1927 = sshll.u32 [#allocation23], 4
      %s1928 = int_to_ptr.vmem [resolvable:$true] %s1927
      %s1929 = sshll.u32 %s24, 4
      %s1930 = int_to_ptr.hbm [resolvable:$true] %s1929
      %1932 = dma.vmem_to_hbm [thread:$0]  %s1928, 32, %s1930, [#allocation4]
    $region153: #{tpu_custom_call.1} parent=1 // pred_fallthru
      _
    // Predicated region
    $region154: #{tpu_custom_call.1} parent=1 // pred_check
      _
    $region155: #{tpu_custom_call.1} parent=1 // pred_check_branch
      %1934 = sbr.rel (0) target = $region157
    $region156: #{tpu_custom_call.1} parent=1 // pred_region
      %1936 = dma.done [#allocation4], 32
    $region157: #{tpu_custom_call.1} parent=1 // pred_fallthru
      _
    %1937 = vsyncpa [#allocation3], 1
    %1938 = vsyncpa [#allocation6], 1
    %1939 = vsyncpa [#allocation9], 1
    %1940 = vsyncpa [#allocation12], 1
    %1941 = vsyncpa [#allocation15], 1
    %1942 = vsyncpa [#allocation18], 1
    %1943 = vsyncpa [#allocation21], 1
    %1944 = vsyncpa [#allocation4], 1

</llo_original>
